<compile_context>
chip_gen: v6e
topology: v6e:2x2x1
jax: 0.10.0
libtpu: 0.0.40
codegen_flags: <defaults>
</compile_context>

<pallas_src>
import jax
import jax.numpy as jnp
from jax import lax
from jax.experimental import pallas as pl
from jax.experimental.pallas import tpu as pltpu


def mmab_kernel(d_ref, g_ref, mband_ref, bvec_ref, alpha_ref,
                sel_ref, comb_ref, wgate_ref, bgate_ref,
                dout_ref, gout_ref, xpad_ref):
    # d_ref, g_ref      : (BB, H, W*C)      lane-dense depth / guidance block
    # mband_ref         : (3, 2*W*C, W*Cr)  banded 3x3 conv weights (depth rows, then guidance rows)
    # bvec_ref          : (1, W*Cr)         conv bias tiled over w
    # alpha_ref         : (1,) in SMEM      PReLU slope
    # sel_ref           : (BB, BB*H)        one-hot per-batch row selector (pooling)
    # comb_ref          : (W*Cr, Cr)        one-hot per-channel comb (pooling)
    # wgate_ref         : (Cr, 2*C)         fused excitation1|excitation2 weights
    # bgate_ref         : (1, 2*C)          fused excitation biases
    # dout_ref, gout_ref: (BB, H, W*C)      lane-dense outputs
    # xpad_ref          : (BB, H+2, 2*W*C)  VMEM scratch, row-padded concat
    BB, H, WC = d_ref.shape
    WCr = bvec_ref.shape[1]
    C2 = wgate_ref.shape[1]
    C = C2 // 2
    W = WC // C
    n_pix = H * W

    # --- build the row-padded, lane-dense concat in VMEM (no HBM roundtrip) ---
    zrow = jnp.zeros((BB, 1, 2 * WC), dtype=jnp.float32)
    xpad_ref[:, 0:1, :] = zrow
    xpad_ref[:, H + 1:H + 2, :] = zrow
    xpad_ref[:, 1:H + 1, 0:WC] = d_ref[...]
    xpad_ref[:, 1:H + 1, WC:2 * WC] = g_ref[...]

    # --- 3x3 conv as 3 banded matmuls (horizontal padding folded into weights) ---
    acc = jnp.zeros((BB * H, WCr), dtype=jnp.float32)
    for kh in range(3):
        slab = xpad_ref[:, kh:kh + H, :].reshape(BB * H, 2 * WC)
        acc = acc + jnp.dot(slab, mband_ref[kh],
                            preferred_element_type=jnp.float32)
    acc = acc + bvec_ref[...]                        # broadcast (1, W*Cr)

    # --- PReLU, single shared slope read from SMEM ---
    alpha = alpha_ref[0]
    fuse = jnp.where(acc >= 0.0, acc, alpha * acc)   # (BB*H, W*Cr)

    # --- single-pass avg + variance pooling; reductions on the MXU ---
    s1 = jnp.dot(jnp.dot(sel_ref[...], fuse, preferred_element_type=jnp.float32),
                 comb_ref[...], preferred_element_type=jnp.float32)       # (BB, Cr) sum x
    s2 = jnp.dot(jnp.dot(sel_ref[...], fuse * fuse, preferred_element_type=jnp.float32),
                 comb_ref[...], preferred_element_type=jnp.float32)       # (BB, Cr) sum x^2
    inv_n = 1.0 / float(n_pix)
    mean = s1 * inv_n
    var = s2 * inv_n - mean * mean
    stat = mean + var                                                     # (BB, Cr)

    # --- fused excitation (both 1x1 convs in one matmul) + sigmoid gates ---
    z = jax.nn.sigmoid(
        jnp.dot(stat, wgate_ref[...], preferred_element_type=jnp.float32)
        + bgate_ref[...])                                                 # (BB, 2C)
    d_gate = z[:, :C]
    g_gate = z[:, C:]

    # tile gates across the W pixels of a lane-dense row -> (BB, W*C)
    d_gate_t = jnp.concatenate([d_gate] * W, axis=1)
    g_gate_t = jnp.concatenate([g_gate] * W, axis=1)

    # --- gated outputs / 2 (full-width, unmasked lane-dense stores) ---
    dout_ref[...] = d_ref[...] * d_gate_t[:, None, :] * 0.5
    gout_ref[...] = g_ref[...] * g_gate_t[:, None, :] * 0.5


def mmab_pallas(depth_nchw, guid_nchw, params, batch_block=None):
    B, C, H, W = depth_nchw.shape
    Cr = params["wconv"].shape[0]
    C2 = 2 * C
    WC = W * C
    WCr = W * Cr
    BB = B if batch_block is None else batch_block
    assert B % BB == 0, "batch_block must divide batch"
    f32 = jnp.float32

    # ---- NCHW -> lane-dense (B, H, W*C); single layout pass, no concat/pad copy ----
    d_ld = jnp.transpose(depth_nchw, (0, 2, 3, 1)).reshape(B, H, WC).astype(f32)
    g_ld = jnp.transpose(guid_nchw, (0, 2, 3, 1)).reshape(B, H, WC).astype(f32)

    # ---- banded 3x3 conv weight (3, 2*W*C, W*Cr) ----
    #   mband[kh,       q*C + c, w*Cr + r] = wconv[r, c    , kh, q - w + 1]
    #   mband[kh, W*C + q*C + c, w*Cr + r] = wconv[r, C + c, kh, q - w + 1]
    # (only where 0 <= q - w + 1 < 3; horizontal zero padding is folded in)
    # NOTE: for very large W this banded weight should be tiled over W; at these
    # shapes it is a tiny constant (3 * 256 * 64 floats).
    wk = jnp.transpose(params["wconv"], (2, 3, 1, 0)).astype(f32)      # (3, 3, 2C, Cr)
    q_i = jnp.arange(W)[None, :, None]
    w_i = jnp.arange(W)[None, None, :]
    kw_i = jnp.arange(3)[:, None, None]
    tmap = (q_i == w_i + kw_i - 1).astype(f32)                         # (3, W, W)
    band = jnp.einsum("kqw,Kkir->Kqiwr", tmap, wk)                     # (3, W, 2C, W, Cr)
    band_d = band[:, :, :C].reshape(3, WC, WCr)
    band_g = band[:, :, C:].reshape(3, WC, WCr)
    mband = jnp.concatenate([band_d, band_g], axis=1)                  # (3, 2*WC, WCr)

    bvec = jnp.tile(params["bconv"].reshape(1, Cr).astype(f32), (1, W))   # (1, W*Cr)
    alpha = jnp.full((1,), params["alpha"], dtype=f32)                    # SMEM scalar

    sel = jnp.repeat(jnp.eye(BB, dtype=f32), H, axis=1)                # (BB, BB*H)
    comb = jnp.tile(jnp.eye(Cr, dtype=f32), (W, 1))                    # (W*Cr, Cr)

    wgate = jnp.concatenate([params["w1"][:, :, 0, 0].T,
                             params["w2"][:, :, 0, 0].T], axis=1).astype(f32)   # (Cr, 2C)
    bgate = jnp.concatenate([params["b1"], params["b2"]]).reshape(1, C2).astype(f32)

    grid_spec = pltpu.PrefetchScalarGridSpec(
        num_scalar_prefetch=0,
        grid=(B // BB,),
        in_specs=[
            pl.BlockSpec((BB, H, WC), lambda i: (i, 0, 0)),            # depth (lane-dense)
            pl.BlockSpec((BB, H, WC), lambda i: (i, 0, 0)),            # guidance (lane-dense)
            pl.BlockSpec((3, 2 * WC, WCr), lambda i: (0, 0, 0)),       # banded conv weights
            pl.BlockSpec((1, WCr), lambda i: (0, 0)),                  # conv bias (tiled)
            pl.BlockSpec(memory_space=pltpu.MemorySpace.SMEM),         # PReLU alpha
            pl.BlockSpec((BB, BB * H), lambda i: (0, 0)),              # per-batch selector
            pl.BlockSpec((WCr, Cr), lambda i: (0, 0)),                 # per-channel comb
            pl.BlockSpec((Cr, C2), lambda i: (0, 0)),                  # fused gate weight
            pl.BlockSpec((1, C2), lambda i: (0, 0)),                   # fused gate bias
        ],
        out_specs=[
            pl.BlockSpec((BB, H, WC), lambda i: (i, 0, 0)),
            pl.BlockSpec((BB, H, WC), lambda i: (i, 0, 0)),
        ],
        scratch_shapes=[pltpu.VMEM((BB, H + 2, 2 * WC), jnp.float32)],
    )

    cost = pl.CostEstimate(
        flops=int(2 * (B * H) * (2 * WC) * WCr * 3          # banded conv matmuls
                  + 4 * (B * H) * WCr                       # pooling passes
                  + 2 * B * Cr * C2),                       # gate matmul
        transcendentals=int(B * C2),
        bytes_accessed=int(4 * (4 * B * H * WC              # 2 in + 2 out
                                + 3 * 2 * WC * WCr          # banded weights
                                + WCr + BB * BB * H + WCr * Cr + Cr * C2 + C2)),
    )

    dout_ld, gout_ld = pl.pallas_call(
        mmab_kernel,
        out_shape=(jax.ShapeDtypeStruct((B, H, WC), f32),
                   jax.ShapeDtypeStruct((B, H, WC), f32)),
        grid_spec=grid_spec,
        compiler_params=pltpu.CompilerParams(
            dimension_semantics=("parallel",)),
        cost_estimate=cost,
    )(d_ld, g_ld, mband, bvec, alpha, sel, comb, wgate, bgate)

    # lane-dense (B, H, W*C) -> NCHW
    dout = jnp.transpose(dout_ld.reshape(B, H, W, C), (0, 3, 1, 2))
    gout = jnp.transpose(gout_ld.reshape(B, H, W, C), (0, 3, 1, 2))
    return dout, gout


def mmab_reference(depth, guid, params):
    """Pure-JAX NCHW reference matching the PyTorch module."""
    x = jnp.concatenate([depth, guid], axis=1)
    y = lax.conv_general_dilated(
        x, params["wconv"], window_strides=(1, 1),
        padding=((1, 1), (1, 1)),
        dimension_numbers=("NCHW", "OIHW", "NCHW"),
        precision=lax.Precision.HIGHEST)
    y = y + params["bconv"].reshape(1, -1, 1, 1)
    y = jnp.where(y >= 0.0, y, params["alpha"] * y)           # PReLU

    avg = jnp.mean(y, axis=(2, 3))                            # avg pool
    mu = jnp.mean(y, axis=(2, 3), keepdims=True)
    var = jnp.mean((y - mu) ** 2, axis=(2, 3))                # variance pool
    stat = avg + var                                          # (B, Cr)

    w1 = params["w1"][:, :, 0, 0]                             # (C, Cr)
    w2 = params["w2"][:, :, 0, 0]
    d_gate = jax.nn.sigmoid(
        jnp.dot(stat, w1.T, precision=lax.Precision.HIGHEST) + params["b1"])
    g_gate = jax.nn.sigmoid(
        jnp.dot(stat, w2.T, precision=lax.Precision.HIGHEST) + params["b2"])
    d_out = d_gate[:, :, None, None] * depth / 2.0
    g_out = g_gate[:, :, None, None] * guid / 2.0
    return d_out, g_out


if __name__ == "__main__":
    B, C, H, W = 2, 8, 16, 16           # num_features = 8
    reduction_ratio = 4
    Cr = 2 * C // reduction_ratio       # squeezed channels

    key = jax.random.PRNGKey(0)
    ks = jax.random.split(key, 8)
    params = {
        "wconv": jax.random.normal(ks[0], (Cr, 2 * C, 3, 3), jnp.float32) * 0.1,
        "bconv": jax.random.normal(ks[1], (Cr,), jnp.float32) * 0.1,
        "alpha": jnp.float32(0.25),     # PReLU default init
        "w1": jax.random.normal(ks[2], (C, Cr, 1, 1), jnp.float32) * 0.1,
        "b1": jax.random.normal(ks[3], (C,), jnp.float32) * 0.1,
        "w2": jax.random.normal(ks[4], (C, Cr, 1, 1), jnp.float32) * 0.1,
        "b2": jax.random.normal(ks[5], (C,), jnp.float32) * 0.1,
    }
    depth = jax.random.normal(ks[6], (B, C, H, W), jnp.float32)
    guidance = jax.random.normal(ks[7], (B, C, H, W), jnp.float32)

    mmab_fn = jax.jit(mmab_pallas)
    d_out, g_out = mmab_fn(depth, guidance, params)
    jax.block_until_ready((d_out, g_out))

    d_ref, g_ref = mmab_reference(depth, guidance, params)
    assert d_out.shape == (B, C, H, W) and g_out.shape == (B, C, H, W)
    assert jnp.allclose(d_out, d_ref, rtol=2e-3, atol=2e-3), "depth output mismatch"
    assert jnp.allclose(g_out, g_ref, rtol=2e-3, atol=2e-3), "guidance output mismatch"

    print("KERNEL_OK")
</pallas_src>

<mosaic_0001>
module attributes {stable_mosaic.version = 11 : i64} {
  func.func @mmab_kernel(%arg0: i32, %arg1: memref<2x16x128xf32, #tpu.memory_space<vmem>>, %arg2: memref<2x16x128xf32, #tpu.memory_space<vmem>>, %arg3: memref<3x256x64xf32, #tpu.memory_space<vmem>>, %arg4: memref<1x64xf32, #tpu.memory_space<vmem>>, %arg5: memref<1xf32, #tpu.memory_space<smem>>, %arg6: memref<2x32xf32, #tpu.memory_space<vmem>>, %arg7: memref<64x4xf32, #tpu.memory_space<vmem>>, %arg8: memref<4x16xf32, #tpu.memory_space<vmem>>, %arg9: memref<1x16xf32, #tpu.memory_space<vmem>>, %arg10: memref<2x16x128xf32, #tpu.memory_space<vmem>>, %arg11: memref<2x16x128xf32, #tpu.memory_space<vmem>>, %arg12: memref<2x18x256xf32, #tpu.memory_space<vmem>>) attributes {dimension_semantics = [#tpu.dimension_semantics<parallel>], iteration_bounds = array<i64: 1>, scalar_prefetch = 0 : i64, scratch_operands = 1 : i64, tpu.core_type = #tpu.core_type<tc>, window_params = [{transform_indices = @transform_0, window_bounds = array<i64: 2, 16, 128>}, {transform_indices = @transform_1, window_bounds = array<i64: 2, 16, 128>}, {pipeline_mode = #tpu.pipeline_mode<synchronous>, transform_indices = @transform_2, window_bounds = array<i64: 3, 256, 64>}, {pipeline_mode = #tpu.pipeline_mode<synchronous>, transform_indices = @transform_3, window_bounds = array<i64: 1, 64>}, {transform_indices = @transform_4, window_bounds = array<i64: 1>}, {pipeline_mode = #tpu.pipeline_mode<synchronous>, transform_indices = @transform_5, window_bounds = array<i64: 2, 32>}, {pipeline_mode = #tpu.pipeline_mode<synchronous>, transform_indices = @transform_6, window_bounds = array<i64: 64, 4>}, {pipeline_mode = #tpu.pipeline_mode<synchronous>, transform_indices = @transform_7, window_bounds = array<i64: 4, 16>}, {pipeline_mode = #tpu.pipeline_mode<synchronous>, transform_indices = @transform_8, window_bounds = array<i64: 1, 16>}, {transform_indices = @transform_9, window_bounds = array<i64: 2, 16, 128>}, {transform_indices = @transform_10, window_bounds = array<i64: 2, 16, 128>}]} {
    %cst = arith.constant 0.000000e+00 : f32
    %0 = vector.broadcast %cst : f32 to vector<2x1x256xf32>
    %c0 = arith.constant 0 : index
    %c0_0 = arith.constant 0 : index
    %c0_1 = arith.constant 0 : index
    %1 = vector.load %arg12[%c0, %c0_0, %c0_1] : memref<2x18x256xf32, #tpu.memory_space<vmem>>, vector<2x1x256xf32>
    tpu.vector_store %arg12[%c0, %c0_0, %c0_1], %0 {strides = array<i32>} : memref<2x18x256xf32, #tpu.memory_space<vmem>>, vector<2x1x256xf32>,
    %c0_2 = arith.constant 0 : index
    %c17 = arith.constant 17 : index
    %c0_3 = arith.constant 0 : index
    %2 = vector.load %arg12[%c0_2, %c17, %c0_3] : memref<2x18x256xf32, #tpu.memory_space<vmem>>, vector<2x1x256xf32>
    tpu.vector_store %arg12[%c0_2, %c17, %c0_3], %0 {strides = array<i32>} : memref<2x18x256xf32, #tpu.memory_space<vmem>>, vector<2x1x256xf32>,
    %c0_4 = arith.constant 0 : index
    %c0_5 = arith.constant 0 : index
    %c0_6 = arith.constant 0 : index
    %3 = vector.load %arg1[%c0_4, %c0_5, %c0_6] : memref<2x16x128xf32, #tpu.memory_space<vmem>>, vector<2x16x128xf32>
    %c0_7 = arith.constant 0 : index
    %c1 = arith.constant 1 : index
    %c0_8 = arith.constant 0 : index
    %4 = vector.load %arg12[%c0_7, %c1, %c0_8] : memref<2x18x256xf32, #tpu.memory_space<vmem>>, vector<2x16x128xf32>
    tpu.vector_store %arg12[%c0_7, %c1, %c0_8], %3 {strides = array<i32>} : memref<2x18x256xf32, #tpu.memory_space<vmem>>, vector<2x16x128xf32>,
    %c0_9 = arith.constant 0 : index
    %c0_10 = arith.constant 0 : index
    %c0_11 = arith.constant 0 : index
    %5 = vector.load %arg2[%c0_9, %c0_10, %c0_11] : memref<2x16x128xf32, #tpu.memory_space<vmem>>, vector<2x16x128xf32>
    %c0_12 = arith.constant 0 : index
    %c1_13 = arith.constant 1 : index
    %c128 = arith.constant 128 : index
    %6 = vector.load %arg12[%c0_12, %c1_13, %c128] : memref<2x18x256xf32, #tpu.memory_space<vmem>>, vector<2x16x128xf32>
    tpu.vector_store %arg12[%c0_12, %c1_13, %c128], %5 {strides = array<i32>} : memref<2x18x256xf32, #tpu.memory_space<vmem>>, vector<2x16x128xf32>,
    %cst_14 = arith.constant 0.000000e+00 : f32
    %7 = vector.broadcast %cst_14 : f32 to vector<32x64xf32>
    %c0_15 = arith.constant 0 : index
    %c0_16 = arith.constant 0 : index
    %c0_17 = arith.constant 0 : index
    %8 = vector.load %arg12[%c0_15, %c0_16, %c0_17] : memref<2x18x256xf32, #tpu.memory_space<vmem>>, vector<2x16x256xf32>
    %9 = vector.shape_cast %8 : vector<2x16x256xf32> to vector<32x256xf32>
    %c0_18 = arith.constant 0 : index
    %c0_19 = arith.constant 0 : index
    %c0_20 = arith.constant 0 : index
    %10 = vector.load %arg3[%c0_18, %c0_19, %c0_20] : memref<3x256x64xf32, #tpu.memory_space<vmem>>, vector<1x256x64xf32>
    %11 = vector.shape_cast %10 : vector<1x256x64xf32> to vector<256x64xf32>
    %cst_21 = arith.constant dense<0.000000e+00> : vector<32x64xf32>
    %12 = tpu.matmul %9, %11, %cst_21 {dimension_numbers = #tpu.dot_dimension_numbers<[1], [0], [0], [1], [0, 0, 1, 1], [], []>} : vector<32x256xf32>, vector<256x64xf32>, vector<32x64xf32> -> vector<32x64xf32>
    %13 = arith.addf %7, %12 : vector<32x64xf32>
    %c0_22 = arith.constant 0 : index
    %c1_23 = arith.constant 1 : index
    %c0_24 = arith.constant 0 : index
    %14 = vector.load %arg12[%c0_22, %c1_23, %c0_24] : memref<2x18x256xf32, #tpu.memory_space<vmem>>, vector<2x16x256xf32>
    %15 = vector.shape_cast %14 : vector<2x16x256xf32> to vector<32x256xf32>
    %c1_25 = arith.constant 1 : index
    %c0_26 = arith.constant 0 : index
    %c0_27 = arith.constant 0 : index
    %16 = vector.load %arg3[%c1_25, %c0_26, %c0_27] : memref<3x256x64xf32, #tpu.memory_space<vmem>>, vector<1x256x64xf32>
    %17 = vector.shape_cast %16 : vector<1x256x64xf32> to vector<256x64xf32>
    %cst_28 = arith.constant dense<0.000000e+00> : vector<32x64xf32>
    %18 = tpu.matmul %15, %17, %cst_28 {dimension_numbers = #tpu.dot_dimension_numbers<[1], [0], [0], [1], [0, 0, 1, 1], [], []>} : vector<32x256xf32>, vector<256x64xf32>, vector<32x64xf32> -> vector<32x64xf32>
    %19 = arith.addf %13, %18 : vector<32x64xf32>
    %c0_29 = arith.constant 0 : index
    %c2 = arith.constant 2 : index
    %c0_30 = arith.constant 0 : index
    %20 = vector.load %arg12[%c0_29, %c2, %c0_30] : memref<2x18x256xf32, #tpu.memory_space<vmem>>, vector<2x16x256xf32>
    %21 = vector.shape_cast %20 : vector<2x16x256xf32> to vector<32x256xf32>
    %c2_31 = arith.constant 2 : index
    %c0_32 = arith.constant 0 : index
    %c0_33 = arith.constant 0 : index
    %22 = vector.load %arg3[%c2_31, %c0_32, %c0_33] : memref<3x256x64xf32, #tpu.memory_space<vmem>>, vector<1x256x64xf32>
    %23 = vector.shape_cast %22 : vector<1x256x64xf32> to vector<256x64xf32>
    %cst_34 = arith.constant dense<0.000000e+00> : vector<32x64xf32>
    %24 = tpu.matmul %21, %23, %cst_34 {dimension_numbers = #tpu.dot_dimension_numbers<[1], [0], [0], [1], [0, 0, 1, 1], [], []>} : vector<32x256xf32>, vector<256x64xf32>, vector<32x64xf32> -> vector<32x64xf32>
    %25 = arith.addf %19, %24 : vector<32x64xf32>
    %c0_35 = arith.constant 0 : index
    %c0_36 = arith.constant 0 : index
    %26 = vector.load %arg4[%c0_35, %c0_36] : memref<1x64xf32, #tpu.memory_space<vmem>>, vector<1x64xf32>
    %27 = vector.broadcast %26 : vector<1x64xf32> to vector<32x64xf32>
    %28 = arith.addf %25, %27 : vector<32x64xf32>
    %c0_37 = arith.constant 0 : index
    %29 = memref.load %arg5[%c0_37] : memref<1xf32, #tpu.memory_space<smem>>
    %cst_38 = arith.constant 0.000000e+00 : f32
    %30 = vector.broadcast %cst_38 : f32 to vector<32x64xf32>
    %31 = arith.cmpf oge, %28, %30 : vector<32x64xf32>
    %32 = vector.broadcast %29 : f32 to vector<32x64xf32>
    %33 = arith.mulf %32, %28 : vector<32x64xf32>
    %34 = arith.select %31, %28, %33 : vector<32x64xi1>, vector<32x64xf32>
    %c0_39 = arith.constant 0 : index
    %c0_40 = arith.constant 0 : index
    %35 = vector.load %arg6[%c0_39, %c0_40] : memref<2x32xf32, #tpu.memory_space<vmem>>, vector<2x32xf32>
    %cst_41 = arith.constant dense<0.000000e+00> : vector<2x64xf32>
    %36 = tpu.matmul %35, %34, %cst_41 {dimension_numbers = #tpu.dot_dimension_numbers<[1], [0], [0], [1], [0, 0, 1, 1], [], []>} : vector<2x32xf32>, vector<32x64xf32>, vector<2x64xf32> -> vector<2x64xf32>
    %c0_42 = arith.constant 0 : index
    %c0_43 = arith.constant 0 : index
    %37 = vector.load %arg7[%c0_42, %c0_43] : memref<64x4xf32, #tpu.memory_space<vmem>>, vector<64x4xf32>
    %cst_44 = arith.constant dense<0.000000e+00> : vector<2x4xf32>
    %38 = tpu.matmul %36, %37, %cst_44 {dimension_numbers = #tpu.dot_dimension_numbers<[1], [0], [0], [1], [0, 0, 1, 1], [], []>} : vector<2x64xf32>, vector<64x4xf32>, vector<2x4xf32> -> vector<2x4xf32>
    %c0_45 = arith.constant 0 : index
    %c0_46 = arith.constant 0 : index
    %39 = vector.load %arg6[%c0_45, %c0_46] : memref<2x32xf32, #tpu.memory_space<vmem>>, vector<2x32xf32>
    %40 = arith.mulf %34, %34 : vector<32x64xf32>
    %cst_47 = arith.constant dense<0.000000e+00> : vector<2x64xf32>
    %41 = tpu.matmul %39, %40, %cst_47 {dimension_numbers = #tpu.dot_dimension_numbers<[1], [0], [0], [1], [0, 0, 1, 1], [], []>} : vector<2x32xf32>, vector<32x64xf32>, vector<2x64xf32> -> vector<2x64xf32>
    %c0_48 = arith.constant 0 : index
    %c0_49 = arith.constant 0 : index
    %42 = vector.load %arg7[%c0_48, %c0_49] : memref<64x4xf32, #tpu.memory_space<vmem>>, vector<64x4xf32>
    %cst_50 = arith.constant dense<0.000000e+00> : vector<2x4xf32>
    %43 = tpu.matmul %41, %42, %cst_50 {dimension_numbers = #tpu.dot_dimension_numbers<[1], [0], [0], [1], [0, 0, 1, 1], [], []>} : vector<2x64xf32>, vector<64x4xf32>, vector<2x4xf32> -> vector<2x4xf32>
    %cst_51 = arith.constant 3.906250e-03 : f32
    %44 = vector.broadcast %cst_51 : f32 to vector<2x4xf32>
    %45 = arith.mulf %38, %44 : vector<2x4xf32>
    %cst_52 = arith.constant 3.906250e-03 : f32
    %46 = vector.broadcast %cst_52 : f32 to vector<2x4xf32>
    %47 = arith.mulf %43, %46 : vector<2x4xf32>
    %48 = arith.mulf %45, %45 : vector<2x4xf32>
    %49 = arith.subf %47, %48 : vector<2x4xf32>
    %50 = arith.addf %45, %49 : vector<2x4xf32>
    %c0_53 = arith.constant 0 : index
    %c0_54 = arith.constant 0 : index
    %51 = vector.load %arg8[%c0_53, %c0_54] : memref<4x16xf32, #tpu.memory_space<vmem>>, vector<4x16xf32>
    %cst_55 = arith.constant dense<0.000000e+00> : vector<2x16xf32>
    %52 = tpu.matmul %50, %51, %cst_55 {dimension_numbers = #tpu.dot_dimension_numbers<[1], [0], [0], [1], [0, 0, 1, 1], [], []>} : vector<2x4xf32>, vector<4x16xf32>, vector<2x16xf32> -> vector<2x16xf32>
    %c0_56 = arith.constant 0 : index
    %c0_57 = arith.constant 0 : index
    %53 = vector.load %arg9[%c0_56, %c0_57] : memref<1x16xf32, #tpu.memory_space<vmem>>, vector<1x16xf32>
    %54 = vector.broadcast %53 : vector<1x16xf32> to vector<2x16xf32>
    %55 = arith.addf %52, %54 : vector<2x16xf32>
    %56 = arith.negf %55 : vector<2x16xf32>
    %57 = math.exp %56 : vector<2x16xf32>
    %cst_58 = arith.constant 1.000000e+00 : f32
    %58 = vector.broadcast %cst_58 : f32 to vector<2x16xf32>
    %59 = arith.addf %58, %57 : vector<2x16xf32>
    %60 = arith.divf %58, %59 : vector<2x16xf32>
    %61 = vector.extract_strided_slice %60 {offsets = [0, 0], sizes = [2, 8], strides = [1, 1]} : vector<2x16xf32> to vector<2x8xf32>
    %62 = vector.extract_strided_slice %60 {offsets = [0, 8], sizes = [2, 8], strides = [1, 1]} : vector<2x16xf32> to vector<2x8xf32>
    %63 = tpu.concatenate %61, %61, %61, %61, %61, %61, %61, %61, %61, %61, %61, %61, %61, %61, %61, %61 in 1 : vector<2x8xf32>, vector<2x8xf32>, vector<2x8xf32>, vector<2x8xf32>, vector<2x8xf32>, vector<2x8xf32>, vector<2x8xf32>, vector<2x8xf32>, vector<2x8xf32>, vector<2x8xf32>, vector<2x8xf32>, vector<2x8xf32>, vector<2x8xf32>, vector<2x8xf32>, vector<2x8xf32>, vector<2x8xf32> -> vector<2x128xf32>
    %64 = tpu.concatenate %62, %62, %62, %62, %62, %62, %62, %62, %62, %62, %62, %62, %62, %62, %62, %62 in 1 : vector<2x8xf32>, vector<2x8xf32>, vector<2x8xf32>, vector<2x8xf32>, vector<2x8xf32>, vector<2x8xf32>, vector<2x8xf32>, vector<2x8xf32>, vector<2x8xf32>, vector<2x8xf32>, vector<2x8xf32>, vector<2x8xf32>, vector<2x8xf32>, vector<2x8xf32>, vector<2x8xf32>, vector<2x8xf32> -> vector<2x128xf32>
    %c0_59 = arith.constant 0 : index
    %c0_60 = arith.constant 0 : index
    %c0_61 = arith.constant 0 : index
    %65 = vector.load %arg1[%c0_59, %c0_60, %c0_61] : memref<2x16x128xf32, #tpu.memory_space<vmem>>, vector<2x16x128xf32>
    %66 = vector.shape_cast %63 : vector<2x128xf32> to vector<2x1x128xf32>
    %67 = vector.broadcast %66 : vector<2x1x128xf32> to vector<2x16x128xf32>
    %68 = arith.mulf %65, %67 : vector<2x16x128xf32>
    %cst_62 = arith.constant 5.000000e-01 : f32
    %69 = vector.broadcast %cst_62 : f32 to vector<2x16x128xf32>
    %70 = arith.mulf %68, %69 : vector<2x16x128xf32>
    %c0_63 = arith.constant 0 : index
    %c0_64 = arith.constant 0 : index
    %c0_65 = arith.constant 0 : index
    %71 = vector.load %arg10[%c0_63, %c0_64, %c0_65] : memref<2x16x128xf32, #tpu.memory_space<vmem>>, vector<2x16x128xf32>
    tpu.vector_store %arg10[%c0_63, %c0_64, %c0_65], %70 {strides = array<i32>} : memref<2x16x128xf32, #tpu.memory_space<vmem>>, vector<2x16x128xf32>,
    %c0_66 = arith.constant 0 : index
    %c0_67 = arith.constant 0 : index
    %c0_68 = arith.constant 0 : index
    %72 = vector.load %arg2[%c0_66, %c0_67, %c0_68] : memref<2x16x128xf32, #tpu.memory_space<vmem>>, vector<2x16x128xf32>
    %73 = vector.shape_cast %64 : vector<2x128xf32> to vector<2x1x128xf32>
    %74 = vector.broadcast %73 : vector<2x1x128xf32> to vector<2x16x128xf32>
    %75 = arith.mulf %72, %74 : vector<2x16x128xf32>
    %cst_69 = arith.constant 5.000000e-01 : f32
    %76 = vector.broadcast %cst_69 : f32 to vector<2x16x128xf32>
    %77 = arith.mulf %75, %76 : vector<2x16x128xf32>
    %c0_70 = arith.constant 0 : index
    %c0_71 = arith.constant 0 : index
    %c0_72 = arith.constant 0 : index
    %78 = vector.load %arg11[%c0_70, %c0_71, %c0_72] : memref<2x16x128xf32, #tpu.memory_space<vmem>>, vector<2x16x128xf32>
    tpu.vector_store %arg11[%c0_70, %c0_71, %c0_72], %77 {strides = array<i32>} : memref<2x16x128xf32, #tpu.memory_space<vmem>>, vector<2x16x128xf32>,
    return
  }
  func.func @transform_0(%arg0: i32) -> (i32, i32, i32) {
    %c0_i32 = arith.constant 0 : i32
    %c0_i32_0 = arith.constant 0 : i32
    %c0_i32_1 = arith.constant 0 : i32
    return %arg0, %c0_i32, %c0_i32_0 : i32, i32, i32
  }
  func.func @transform_1(%arg0: i32) -> (i32, i32, i32) {
    %c0_i32 = arith.constant 0 : i32
    %c0_i32_0 = arith.constant 0 : i32
    %c0_i32_1 = arith.constant 0 : i32
    return %arg0, %c0_i32, %c0_i32_0 : i32, i32, i32
  }
  func.func @transform_2(%arg0: i32) -> (i32, i32, i32) {
    %c0_i32 = arith.constant 0 : i32
    %c0_i32_0 = arith.constant 0 : i32
    %c0_i32_1 = arith.constant 0 : i32
    %c0_i32_2 = arith.constant 0 : i32
    return %c0_i32, %c0_i32_0, %c0_i32_1 : i32, i32, i32
  }
  func.func @transform_3(%arg0: i32) -> (i32, i32) {
    %c0_i32 = arith.constant 0 : i32
    %c0_i32_0 = arith.constant 0 : i32
    %c0_i32_1 = arith.constant 0 : i32
    return %c0_i32, %c0_i32_0 : i32, i32
  }
  func.func @transform_4(%arg0: i32) -> i32 {
    %c0_i32 = arith.constant 0 : i32
    %c0_i32_0 = arith.constant 0 : i32
    return %c0_i32 : i32
  }
  func.func @transform_5(%arg0: i32) -> (i32, i32) {
    %c0_i32 = arith.constant 0 : i32
    %c0_i32_0 = arith.constant 0 : i32
    %c0_i32_1 = arith.constant 0 : i32
    return %c0_i32, %c0_i32_0 : i32, i32
  }
  func.func @transform_6(%arg0: i32) -> (i32, i32) {
    %c0_i32 = arith.constant 0 : i32
    %c0_i32_0 = arith.constant 0 : i32
    %c0_i32_1 = arith.constant 0 : i32
    return %c0_i32, %c0_i32_0 : i32, i32
  }
  func.func @transform_7(%arg0: i32) -> (i32, i32) {
    %c0_i32 = arith.constant 0 : i32
    %c0_i32_0 = arith.constant 0 : i32
    %c0_i32_1 = arith.constant 0 : i32
    return %c0_i32, %c0_i32_0 : i32, i32
  }
  func.func @transform_8(%arg0: i32) -> (i32, i32) {
    %c0_i32 = arith.constant 0 : i32
    %c0_i32_0 = arith.constant 0 : i32
    %c0_i32_1 = arith.constant 0 : i32
    return %c0_i32, %c0_i32_0 : i32, i32
  }
  func.func @transform_9(%arg0: i32) -> (i32, i32, i32) {
    %c0_i32 = arith.constant 0 : i32
    %c0_i32_0 = arith.constant 0 : i32
    %c0_i32_1 = arith.constant 0 : i32
    return %arg0, %c0_i32, %c0_i32_0 : i32, i32, i32
  }
  func.func @transform_10(%arg0: i32) -> (i32, i32, i32) {
    %c0_i32 = arith.constant 0 : i32
    %c0_i32_0 = arith.constant 0 : i32
    %c0_i32_1 = arith.constant 0 : i32
    return %arg0, %c0_i32, %c0_i32_0 : i32, i32, i32
  }
}

</mosaic_0001>

<llo_original>
// kernel: mmab_pallas.1
$region0: #{mmab_pallas.1}
  #allocation0 [shape = 'u32[]', space=smem, size = 0x4, offset = 0x4, fixed_abs, tag = 'smem constant byte address 0x4 - core index']
  #allocation1 [shape = 'u32[144,128]{1,0:T(1,128)}', space=vmem, size = 0x12000, scoped, tag = 'internal scratch']
  #allocation2 [shape = 'f32[2,18,256]{2,1,0:T(8,128)}', space=vmem, size = 0xc000, scoped, tag = 'scratch operand']
  #allocation3 [shape = 'f32[1]{0:T(128)S(6)}', space=smem, size = 0x200, scoped, tag = 'scoped memory for mmab_pallas.1']
  %s0 = inlined_call_operand.vmem [shape: f32[2,16,128], index: 0, kind: input, shape index: {}]
  %s1 = inlined_call_operand.vmem [shape: f32[2,16,128], index: 1, kind: input, shape index: {}]
  %s2 = inlined_call_operand.vmem [shape: f32[3,256,64], index: 2, kind: input, shape index: {}]
  %s3 = inlined_call_operand.vmem [shape: f32[1,64], index: 3, kind: input, shape index: {}]
  %s4 = inlined_call_operand.<no memory space> [shape: f32[1], index: 4, kind: input, shape index: {}]
  %s5 = inlined_call_operand.vmem [shape: f32[2,32], index: 5, kind: input, shape index: {}]
  %s6 = inlined_call_operand.vmem [shape: f32[64,4], index: 6, kind: input, shape index: {}]
  %s7 = inlined_call_operand.vmem [shape: f32[4,16], index: 7, kind: input, shape index: {}]
  %s8 = inlined_call_operand.vmem [shape: f32[1,16], index: 8, kind: input, shape index: {}]
  %s9 = inlined_call_operand.vmem [shape: f32[2,16,128], index: 9, kind: output, shape index: {0}]
  %s10 = inlined_call_operand.vmem [shape: f32[2,16,128], index: 10, kind: output, shape index: {1}]
  %11 = xla_tuple %s9, %s10
  %s12 = sld [smem:[#allocation0]]
  $region54: #{mmab_pallas.1} parent=0
    _
  %s14 = ssub.s32 1, %s12
  %s15 = scalar_select 0, %s14, %s12
  %16 = sst [smem:[#allocation3]] %s4
  // Predicated region
  $region2: #{mmab_pallas.1} parent=0 // pred_check
    _
  $region3: #{mmab_pallas.1} parent=0 // pred_check_branch
    %18 = sbr.rel (0) target = $region5
  $region4: #{mmab_pallas.1} parent=0 // pred_region
    _
  $region5: #{mmab_pallas.1} parent=0 // pred_fallthru
    _
  // Predicated region
  $region6: #{mmab_pallas.1} parent=0 // pred_check
    _
  $region7: #{mmab_pallas.1} parent=0 // pred_check_branch
    %20 = sbr.rel (0) target = $region9
  $region8: #{mmab_pallas.1} parent=0 // pred_region
    _
  $region9: #{mmab_pallas.1} parent=0 // pred_fallthru
    _
  // Predicated region
  $region10: #{mmab_pallas.1} parent=0 // pred_check
    _
  $region11: #{mmab_pallas.1} parent=0 // pred_check_branch
    %22 = sbr.rel (0) target = $region13
  $region12: #{mmab_pallas.1} parent=0 // pred_region
    _
  $region13: #{mmab_pallas.1} parent=0 // pred_fallthru
    _
  // Predicated region
  $region14: #{mmab_pallas.1} parent=0 // pred_check
    _
  $region15: #{mmab_pallas.1} parent=0 // pred_check_branch
    %24 = sbr.rel (0) target = $region17
  $region16: #{mmab_pallas.1} parent=0 // pred_region
    _
  $region17: #{mmab_pallas.1} parent=0 // pred_fallthru
    _
  // Predicated region
  $region18: #{mmab_pallas.1} parent=0 // pred_check
    _
  $region19: #{mmab_pallas.1} parent=0 // pred_check_branch
    %26 = sbr.rel (0) target = $region21
  $region20: #{mmab_pallas.1} parent=0 // pred_region
    _
  $region21: #{mmab_pallas.1} parent=0 // pred_fallthru
    _
  // Predicated region
  $region22: #{mmab_pallas.1} parent=0 // pred_check
    _
  $region23: #{mmab_pallas.1} parent=0 // pred_check_branch
    %28 = sbr.rel (0) target = $region25
  $region24: #{mmab_pallas.1} parent=0 // pred_region
    _
  $region25: #{mmab_pallas.1} parent=0 // pred_fallthru
    _
  // Predicated region
  $region26: #{mmab_pallas.1} parent=0 // pred_check
    _
  $region27: #{mmab_pallas.1} parent=0 // pred_check_branch
    %30 = sbr.rel (0) target = $region29
  $region28: #{mmab_pallas.1} parent=0 // pred_region
    _
  $region29: #{mmab_pallas.1} parent=0 // pred_fallthru
    _
  // Predicated region
  $region30: #{mmab_pallas.1} parent=0 // pred_check
    _
  $region31: #{mmab_pallas.1} parent=0 // pred_check_branch
    %32 = sbr.rel (0) target = $region33
  $region32: #{mmab_pallas.1} parent=0 // pred_region
    _
  $region33: #{mmab_pallas.1} parent=0 // pred_fallthru
    _
  // Predicated region
  $region34: #{mmab_pallas.1} parent=0 // pred_check
    _
  $region35: #{mmab_pallas.1} parent=0 // pred_check_branch
    %34 = sbr.rel (0) target = $region37
  $region36: #{mmab_pallas.1} parent=0 // pred_region
    _
  $region37: #{mmab_pallas.1} parent=0 // pred_fallthru
    _
  %v35 = vlaneseq
  %vm36 = vcmp.ge.s32.totalorder %v35, 0
  %vm37 = vcmp.lt.s32.totalorder %v35, 256
  %vm38 = vmand %vm36, %vm37
  %39 = vst.msk [vmem:[#allocation2] ss:$8 sm:$0x3] %vm38, 0.0
  %40 = vst.msk [vmem:[#allocation2] ss:$8 sm:$0x0] %vm38, 0.0
  %s41 = scalar_lea.vmem [#allocation2], 48
  %42 = vst.msk [vmem:[%s41] ss:$8 sm:$0x3] %vm38, 0.0
  %43 = vst.msk [vmem:[%s41] ss:$8 sm:$0x0] %vm38, 0.0
  %s44 = scalar_lea.vmem [#allocation2], 33
  %45 = vst.msk [vmem:[%s44] ss:$8 sm:$0x3] %vm38, 0.0
  %46 = vst.msk [vmem:[%s44] ss:$8 sm:$0x0] %vm38, 0.0
  %s47 = scalar_lea.vmem [#allocation2], 81
  %48 = vst.msk [vmem:[%s47] ss:$8 sm:$0x3] %vm38, 0.0
  %49 = vst.msk [vmem:[%s47] ss:$8 sm:$0x0] %vm38, 0.0
  %v50 = vld [vmem:[%s0] sm:$0xff]
  %v51 = vld [vmem:[%s0 + $0x8] sm:$0xff]
  %v52 = vld [vmem:[%s0 + $0x10] sm:$0xff]
  %v53 = vld [vmem:[%s0 + $0x18] sm:$0xff]
  %vm58 = vcmask 1040384
  %v59 = vrot.slane %v50, 7
  %v60 = vrot.slane %v51, 7
  %v61 = vsel %vm58, %v59, %v60
  %v62 = vrot.slane %v52, 7
  %v63 = vrot.slane %v53, 7
  %v64 = vsel %vm58, %v62, %v63
  %71 = vst [vmem:[#allocation2] sm:$0xfe] %v59
  %72 = vst [vmem:[#allocation2 + $0x10] sm:$0xff] %v61
  %73 = vst [vmem:[#allocation2 + $0x20] sm:$0x1] %v60
  %74 = vst [vmem:[#allocation2 + $0x30] sm:$0xfe] %v62
  %75 = vst [vmem:[#allocation2 + $0x40] sm:$0xff] %v64
  %76 = vst [vmem:[#allocation2 + $0x50] sm:$0x1] %v63
  %v77 = vld [vmem:[%s1] sm:$0xff]
  %v78 = vld [vmem:[%s1 + $0x8] sm:$0xff]
  %v79 = vld [vmem:[%s1 + $0x10] sm:$0xff]
  %v80 = vld [vmem:[%s1 + $0x18] sm:$0xff]
  %v85 = vrot.slane %v77, 7
  %v86 = vrot.slane %v78, 7
  %v87 = vsel %vm58, %v85, %v86
  %v88 = vrot.slane %v79, 7
  %v89 = vrot.slane %v80, 7
  %v90 = vsel %vm58, %v88, %v89
  %97 = vst [vmem:[#allocation2 + $0x8] sm:$0xfe] %v85
  %98 = vst [vmem:[#allocation2 + $0x18] sm:$0xff] %v87
  %99 = vst [vmem:[#allocation2 + $0x28] sm:$0x1] %v86
  %100 = vst [vmem:[#allocation2 + $0x38] sm:$0xfe] %v88
  %101 = vst [vmem:[#allocation2 + $0x48] sm:$0xff] %v90
  %102 = vst [vmem:[#allocation2 + $0x58] sm:$0x1] %v89
  %v103 = vld [vmem:[#allocation2] sm:$0xff]
  %v104 = vld [vmem:[#allocation2 + $0x8] sm:$0xff]
  %v105 = vld [vmem:[#allocation2 + $0x10] sm:$0xff]
  %v106 = vld [vmem:[#allocation2 + $0x18] sm:$0xff]
  %v107 = vld [vmem:[#allocation2 + $0x30] sm:$0xff]
  %v108 = vld [vmem:[#allocation2 + $0x38] sm:$0xff]
  %v109 = vld [vmem:[#allocation2 + $0x40] sm:$0xff]
  %v110 = vld [vmem:[#allocation2 + $0x48] sm:$0xff]
  %v111 = vld [vmem:[%s2] sm:$0xff]
  %v112 = vld [vmem:[%s2 + $0x8] sm:$0xff]
  %v113 = vld [vmem:[%s2 + $0x10] sm:$0xff]
  %v114 = vld [vmem:[%s2 + $0x18] sm:$0xff]
  %v115 = vld [vmem:[%s2 + $0x20] sm:$0xff]
  %v116 = vld [vmem:[%s2 + $0x28] sm:$0xff]
  %v117 = vld [vmem:[%s2 + $0x30] sm:$0xff]
  %v118 = vld [vmem:[%s2 + $0x38] sm:$0xff]
  %v119 = vld [vmem:[%s2 + $0x40] sm:$0xff]
  %v120 = vld [vmem:[%s2 + $0x48] sm:$0xff]
  %v121 = vld [vmem:[%s2 + $0x50] sm:$0xff]
  %v122 = vld [vmem:[%s2 + $0x58] sm:$0xff]
  %v123 = vld [vmem:[%s2 + $0x60] sm:$0xff]
  %v124 = vld [vmem:[%s2 + $0x68] sm:$0xff]
  %v125 = vld [vmem:[%s2 + $0x70] sm:$0xff]
  %v126 = vld [vmem:[%s2 + $0x78] sm:$0xff]
  %v127 = vld [vmem:[%s2 + $0x80] sm:$0xff]
  %v128 = vld [vmem:[%s2 + $0x88] sm:$0xff]
  %v129 = vld [vmem:[%s2 + $0x90] sm:$0xff]
  %v130 = vld [vmem:[%s2 + $0x98] sm:$0xff]
  %v131 = vld [vmem:[%s2 + $0xa0] sm:$0xff]
  %v132 = vld [vmem:[%s2 + $0xa8] sm:$0xff]
  %v133 = vld [vmem:[%s2 + $0xb0] sm:$0xff]
  %v134 = vld [vmem:[%s2 + $0xb8] sm:$0xff]
  %v135 = vld [vmem:[%s2 + $0xc0] sm:$0xff]
  %v136 = vld [vmem:[%s2 + $0xc8] sm:$0xff]
  %v137 = vld [vmem:[%s2 + $0xd0] sm:$0xff]
  %v138 = vld [vmem:[%s2 + $0xd8] sm:$0xff]
  %v139 = vld [vmem:[%s2 + $0xe0] sm:$0xff]
  %v140 = vld [vmem:[%s2 + $0xe8] sm:$0xff]
  %v141 = vld [vmem:[%s2 + $0xf0] sm:$0xff]
  %v142 = vld [vmem:[%s2 + $0xf8] sm:$0xff]
  %v143 = vld [vmem:[#allocation2] sm:$0xfe]
  %v144 = vld [vmem:[#allocation2 + $0x8] sm:$0xfe]
  %v145 = vld [vmem:[#allocation2 + $0x20] sm:$0x1]
  %v146 = vld [vmem:[#allocation2 + $0x28] sm:$0x1]
  %v147 = vld [vmem:[#allocation2 + $0x30] sm:$0xfe]
  %v148 = vld [vmem:[#allocation2 + $0x38] sm:$0xfe]
  %v149 = vld [vmem:[#allocation2 + $0x50] sm:$0x1]
  %v150 = vld [vmem:[#allocation2 + $0x58] sm:$0x1]
  %vm163 = vcmask 1046528
  %v164 = vrot.slane %v143, 1
  %v165 = vrot.slane %v105, 1
  %v166 = vsel %vm163, %v164, %v165
  %v167 = vrot.slane %v144, 1
  %v168 = vrot.slane %v106, 1
  %v169 = vsel %vm163, %v167, %v168
  %v170 = vrot.slane %v145, 1
  %v171 = vsel %vm163, %v165, %v170
  %v172 = vrot.slane %v146, 1
  %v173 = vsel %vm163, %v168, %v172
  %v174 = vrot.slane %v147, 1
  %v175 = vrot.slane %v109, 1
  %v176 = vsel %vm163, %v174, %v175
  %v177 = vrot.slane %v148, 1
  %v178 = vrot.slane %v110, 1
  %v179 = vsel %vm163, %v177, %v178
  %v180 = vrot.slane %v149, 1
  %v181 = vsel %vm163, %v175, %v180
  %v182 = vrot.slane %v150, 1
  %v183 = vsel %vm163, %v178, %v182
  %s192 = scalar_lea.vmem %s2, 256
  %v193 = vld [vmem:[%s192] sm:$0xff]
  %v194 = vld [vmem:[%s192 + $0x8] sm:$0xff]
  %v195 = vld [vmem:[%s192 + $0x10] sm:$0xff]
  %v196 = vld [vmem:[%s192 + $0x18] sm:$0xff]
  %v197 = vld [vmem:[%s192 + $0x20] sm:$0xff]
  %v198 = vld [vmem:[%s192 + $0x28] sm:$0xff]
  %v199 = vld [vmem:[%s192 + $0x30] sm:$0xff]
  %v200 = vld [vmem:[%s192 + $0x38] sm:$0xff]
  %v201 = vld [vmem:[%s192 + $0x40] sm:$0xff]
  %v202 = vld [vmem:[%s192 + $0x48] sm:$0xff]
  %v203 = vld [vmem:[%s192 + $0x50] sm:$0xff]
  %v204 = vld [vmem:[%s192 + $0x58] sm:$0xff]
  %v205 = vld [vmem:[%s192 + $0x60] sm:$0xff]
  %v206 = vld [vmem:[%s192 + $0x68] sm:$0xff]
  %v207 = vld [vmem:[%s192 + $0x70] sm:$0xff]
  %v208 = vld [vmem:[%s192 + $0x78] sm:$0xff]
  %v209 = vld [vmem:[%s192 + $0x80] sm:$0xff]
  %v210 = vld [vmem:[%s192 + $0x88] sm:$0xff]
  %v211 = vld [vmem:[%s192 + $0x90] sm:$0xff]
  %v212 = vld [vmem:[%s192 + $0x98] sm:$0xff]
  %v213 = vld [vmem:[%s192 + $0xa0] sm:$0xff]
  %v214 = vld [vmem:[%s192 + $0xa8] sm:$0xff]
  %v215 = vld [vmem:[%s192 + $0xb0] sm:$0xff]
  %v216 = vld [vmem:[%s192 + $0xb8] sm:$0xff]
  %v217 = vld [vmem:[%s192 + $0xc0] sm:$0xff]
  %v218 = vld [vmem:[%s192 + $0xc8] sm:$0xff]
  %v219 = vld [vmem:[%s192 + $0xd0] sm:$0xff]
  %v220 = vld [vmem:[%s192 + $0xd8] sm:$0xff]
  %v221 = vld [vmem:[%s192 + $0xe0] sm:$0xff]
  %v222 = vld [vmem:[%s192 + $0xe8] sm:$0xff]
  %v223 = vld [vmem:[%s192 + $0xf0] sm:$0xff]
  %v224 = vld [vmem:[%s192 + $0xf8] sm:$0xff]
  %225 = vmatprep.subr.mxu0 0.0
  %226 = vmatpush1.msra.mxu0 %v208
  %227 = vmatprep.subr.mxu0 0.0
  %228 = vmatpush1.msra.mxu0 %v207
  %229 = vmatprep.subr.mxu0 0.0
  %230 = vmatpush1.msra.mxu0 %v206
  %231 = vmatprep.subr.mxu0 0.0
  %232 = vmatpush1.msra.mxu0 %v205
  %233 = vmatprep.subr.mxu0 0.0
  %234 = vmatpush1.msra.mxu0 %v204
  %235 = vmatprep.subr.mxu0 0.0
  %236 = vmatpush1.msra.mxu0 %v203
  %237 = vmatprep.subr.mxu0 0.0
  %238 = vmatpush1.msra.mxu0 %v202
  %239 = vmatprep.subr.mxu0 0.0
  %240 = vmatpush1.msra.mxu0 %v201
  %241 = vmatprep.subr.mxu0 0.0
  %242 = vmatpush1.msra.mxu0 %v200
  %243 = vmatprep.subr.mxu0 0.0
  %244 = vmatpush1.msra.mxu0 %v199
  %245 = vmatprep.subr.mxu0 0.0
  %246 = vmatpush1.msra.mxu0 %v198
  %247 = vmatprep.subr.mxu0 0.0
  %248 = vmatpush1.msra.mxu0 %v197
  %249 = vmatprep.subr.mxu0 0.0
  %250 = vmatpush1.msra.mxu0 %v196
  %251 = vmatprep.subr.mxu0 0.0
  %252 = vmatpush1.msra.mxu0 %v195
  %253 = vmatprep.subr.mxu0 0.0
  %254 = vmatpush1.msra.mxu0 %v194
  %255 = vmatprep.subr.mxu0 0.0
  %256 = vmatpush1.msra.mxu0 %v193
  %257 = vmatprep.subr.mxu0 0.0
  %258 = vmatpush2.msra.mxu0 %v224
  %259 = vmatprep.subr.mxu0 0.0
  %260 = vmatpush2.msra.mxu0 %v223
  %261 = vmatprep.subr.mxu0 0.0
  %262 = vmatpush2.msra.mxu0 %v222
  %263 = vmatprep.subr.mxu0 0.0
  %264 = vmatpush2.msra.mxu0 %v221
  %265 = vmatprep.subr.mxu0 0.0
  %266 = vmatpush2.msra.mxu0 %v220
  %267 = vmatprep.subr.mxu0 0.0
  %268 = vmatpush2.msra.mxu0 %v219
  %269 = vmatprep.subr.mxu0 0.0
  %270 = vmatpush2.msra.mxu0 %v218
  %271 = vmatprep.subr.mxu0 0.0
  %272 = vmatpush2.msra.mxu0 %v217
  %273 = vmatprep.subr.mxu0 0.0
  %274 = vmatpush2.msra.mxu0 %v216
  %275 = vmatprep.subr.mxu0 0.0
  %276 = vmatpush2.msra.mxu0 %v215
  %277 = vmatprep.subr.mxu0 0.0
  %278 = vmatpush2.msra.mxu0 %v214
  %279 = vmatprep.subr.mxu0 0.0
  %280 = vmatpush2.msra.mxu0 %v213
  %281 = vmatprep.subr.mxu0 0.0
  %282 = vmatpush2.msra.mxu0 %v212
  %283 = vmatprep.subr.mxu0 0.0
  %284 = vmatpush2.msra.mxu0 %v211
  %285 = vmatprep.subr.mxu0 0.0
  %286 = vmatpush2.msra.mxu0 %v210
  %287 = vmatprep.subr.mxu0 0.0
  %288 = vmatpush2.msra.mxu0 %v209
  %289 = vmatprep.mubr.f32.mxu0 %v169
  %290 = vmatmul.mubr.f32.gmra.mxu0 %v166
  %v291 = vpop.f32.mrf.mxu0
  %v292 = vadd.f32 0.0, %v291
  %v293 = vpop.f32.mrf.mxu0
  %294 = vmatprep.mubr.f32.mxu0 %v173
  %295 = vmatmul.mubr.f32.gmra.mxu0 %v171
  %v296 = vpop.f32.mrf.mxu0
  %v297 = vadd.f32 0.0, %v296
  %v298 = vpop.f32.mrf.mxu0
  %299 = vmatprep.mubr.f32.mxu0 %v179
  %300 = vmatmul.mubr.f32.gmra.mxu0 %v176
  %v301 = vpop.f32.mrf.mxu0
  %v302 = vadd.f32 0.0, %v301
  %v303 = vpop.f32.mrf.mxu0
  %304 = vmatprep.mubr.f32.mxu0 %v183
  %305 = vmatmul.mubr.f32.gmra.mxu0 %v181
  %v306 = vpop.f32.mrf.mxu0
  %v307 = vadd.f32 0.0, %v306
  %v308 = vpop.f32.mrf.mxu0
  %309 = vdwg.mxu0
  %310 = vmatprep.subr.mxu0 0.0
  %311 = vmatpush1.msra.mxu0 %v126
  %312 = vmatprep.subr.mxu0 0.0
  %313 = vmatpush1.msra.mxu0 %v125
  %314 = vmatprep.subr.mxu0 0.0
  %315 = vmatpush1.msra.mxu0 %v124
  %316 = vmatprep.subr.mxu0 0.0
  %317 = vmatpush1.msra.mxu0 %v123
  %318 = vmatprep.subr.mxu0 0.0
  %319 = vmatpush1.msra.mxu0 %v122
  %320 = vmatprep.subr.mxu0 0.0
  %321 = vmatpush1.msra.mxu0 %v121
  %322 = vmatprep.subr.mxu0 0.0
  %323 = vmatpush1.msra.mxu0 %v120
  %324 = vmatprep.subr.mxu0 0.0
  %325 = vmatpush1.msra.mxu0 %v119
  %326 = vmatprep.subr.mxu0 0.0
  %327 = vmatpush1.msra.mxu0 %v118
  %328 = vmatprep.subr.mxu0 0.0
  %329 = vmatpush1.msra.mxu0 %v117
  %330 = vmatprep.subr.mxu0 0.0
  %331 = vmatpush1.msra.mxu0 %v116
  %332 = vmatprep.subr.mxu0 0.0
  %333 = vmatpush1.msra.mxu0 %v115
  %334 = vmatprep.subr.mxu0 0.0
  %335 = vmatpush1.msra.mxu0 %v114
  %336 = vmatprep.subr.mxu0 0.0
  %337 = vmatpush1.msra.mxu0 %v113
  %338 = vmatprep.subr.mxu0 0.0
  %339 = vmatpush1.msra.mxu0 %v112
  %340 = vmatprep.subr.mxu0 0.0
  %341 = vmatpush1.msra.mxu0 %v111
  %342 = vmatprep.subr.mxu0 0.0
  %343 = vmatpush2.msra.mxu0 %v142
  %344 = vmatprep.subr.mxu0 0.0
  %345 = vmatpush2.msra.mxu0 %v141
  %346 = vmatprep.subr.mxu0 0.0
  %347 = vmatpush2.msra.mxu0 %v140
  %348 = vmatprep.subr.mxu0 0.0
  %349 = vmatpush2.msra.mxu0 %v139
  %350 = vmatprep.subr.mxu0 0.0
  %351 = vmatpush2.msra.mxu0 %v138
  %352 = vmatprep.subr.mxu0 0.0
  %353 = vmatpush2.msra.mxu0 %v137
  %354 = vmatprep.subr.mxu0 0.0
  %355 = vmatpush2.msra.mxu0 %v136
  %356 = vmatprep.subr.mxu0 0.0
  %357 = vmatpush2.msra.mxu0 %v135
  %358 = vmatprep.subr.mxu0 0.0
  %359 = vmatpush2.msra.mxu0 %v134
  %360 = vmatprep.subr.mxu0 0.0
  %361 = vmatpush2.msra.mxu0 %v133
  %362 = vmatprep.subr.mxu0 0.0
  %363 = vmatpush2.msra.mxu0 %v132
  %364 = vmatprep.subr.mxu0 0.0
  %365 = vmatpush2.msra.mxu0 %v131
  %366 = vmatprep.subr.mxu0 0.0
  %367 = vmatpush2.msra.mxu0 %v130
  %368 = vmatprep.subr.mxu0 0.0
  %369 = vmatpush2.msra.mxu0 %v129
  %370 = vmatprep.subr.mxu0 0.0
  %371 = vmatpush2.msra.mxu0 %v128
  %372 = vmatprep.subr.mxu0 0.0
  %373 = vmatpush2.msra.mxu0 %v127
  %374 = vmatprep.mubr.f32.mxu0 %v104
  %375 = vmatmul.mubr.f32.gmra.mxu0 %v103
  %v376 = vpop.f32.mrf.mxu0
  %v377 = vadd.f32 %v292, %v376
  %v378 = vpop.f32.mrf.mxu0
  %379 = vmatprep.mubr.f32.mxu0 %v106
  %380 = vmatmul.mubr.f32.gmra.mxu0 %v105
  %v381 = vpop.f32.mrf.mxu0
  %v382 = vadd.f32 %v297, %v381
  %v383 = vpop.f32.mrf.mxu0
  %384 = vmatprep.mubr.f32.mxu0 %v108
  %385 = vmatmul.mubr.f32.gmra.mxu0 %v107
  %v386 = vpop.f32.mrf.mxu0
  %v387 = vadd.f32 %v302, %v386
  %v388 = vpop.f32.mrf.mxu0
  %389 = vmatprep.mubr.f32.mxu0 %v110
  %390 = vmatmul.mubr.f32.gmra.mxu0 %v109
  %v391 = vpop.f32.mrf.mxu0
  %v392 = vadd.f32 %v307, %v391
  %v393 = vpop.f32.mrf.mxu0
  %394 = vdwg.mxu0
  %v395 = vld [vmem:[#allocation2] sm:$0xfc]
  %v396 = vld [vmem:[#allocation2 + $0x8] sm:$0xfc]
  %v397 = vld [vmem:[#allocation2 + $0x20] sm:$0x3]
  %v398 = vld [vmem:[#allocation2 + $0x28] sm:$0x3]
  %v399 = vld [vmem:[#allocation2 + $0x30] sm:$0xfc]
  %v400 = vld [vmem:[#allocation2 + $0x38] sm:$0xfc]
  %v401 = vld [vmem:[#allocation2 + $0x50] sm:$0x3]
  %v402 = vld [vmem:[#allocation2 + $0x58] sm:$0x3]
  %vm411 = vcmask 1045504
  %v412 = vrot.slane %v395, 2
  %v413 = vrot.slane %v105, 2
  %v414 = vsel %vm411, %v412, %v413
  %v415 = vrot.slane %v396, 2
  %v416 = vrot.slane %v106, 2
  %v417 = vsel %vm411, %v415, %v416
  %v418 = vrot.slane %v397, 2
  %v419 = vsel %vm411, %v413, %v418
  %v420 = vrot.slane %v398, 2
  %v421 = vsel %vm411, %v416, %v420
  %v422 = vrot.slane %v399, 2
  %v423 = vrot.slane %v109, 2
  %v424 = vsel %vm411, %v422, %v423
  %v425 = vrot.slane %v400, 2
  %v426 = vrot.slane %v110, 2
  %v427 = vsel %vm411, %v425, %v426
  %v428 = vrot.slane %v401, 2
  %v429 = vsel %vm411, %v423, %v428
  %v430 = vrot.slane %v402, 2
  %v431 = vsel %vm411, %v426, %v430
  %s440 = scalar_lea.vmem %s2, 512
  %v441 = vld [vmem:[%s440] sm:$0xff]
  %v442 = vld [vmem:[%s440 + $0x8] sm:$0xff]
  %v443 = vld [vmem:[%s440 + $0x10] sm:$0xff]
  %v444 = vld [vmem:[%s440 + $0x18] sm:$0xff]
  %v445 = vld [vmem:[%s440 + $0x20] sm:$0xff]
  %v446 = vld [vmem:[%s440 + $0x28] sm:$0xff]
  %v447 = vld [vmem:[%s440 + $0x30] sm:$0xff]
  %v448 = vld [vmem:[%s440 + $0x38] sm:$0xff]
  %v449 = vld [vmem:[%s440 + $0x40] sm:$0xff]
  %v450 = vld [vmem:[%s440 + $0x48] sm:$0xff]
  %v451 = vld [vmem:[%s440 + $0x50] sm:$0xff]
  %v452 = vld [vmem:[%s440 + $0x58] sm:$0xff]
  %v453 = vld [vmem:[%s440 + $0x60] sm:$0xff]
  %v454 = vld [vmem:[%s440 + $0x68] sm:$0xff]
  %v455 = vld [vmem:[%s440 + $0x70] sm:$0xff]
  %v456 = vld [vmem:[%s440 + $0x78] sm:$0xff]
  %v457 = vld [vmem:[%s440 + $0x80] sm:$0xff]
  %v458 = vld [vmem:[%s440 + $0x88] sm:$0xff]
  %v459 = vld [vmem:[%s440 + $0x90] sm:$0xff]
  %v460 = vld [vmem:[%s440 + $0x98] sm:$0xff]
  %v461 = vld [vmem:[%s440 + $0xa0] sm:$0xff]
  %v462 = vld [vmem:[%s440 + $0xa8] sm:$0xff]
  %v463 = vld [vmem:[%s440 + $0xb0] sm:$0xff]
  %v464 = vld [vmem:[%s440 + $0xb8] sm:$0xff]
  %v465 = vld [vmem:[%s440 + $0xc0] sm:$0xff]
  %v466 = vld [vmem:[%s440 + $0xc8] sm:$0xff]
  %v467 = vld [vmem:[%s440 + $0xd0] sm:$0xff]
  %v468 = vld [vmem:[%s440 + $0xd8] sm:$0xff]
  %v469 = vld [vmem:[%s440 + $0xe0] sm:$0xff]
  %v470 = vld [vmem:[%s440 + $0xe8] sm:$0xff]
  %v471 = vld [vmem:[%s440 + $0xf0] sm:$0xff]
  %v472 = vld [vmem:[%s440 + $0xf8] sm:$0xff]
  %473 = vmatprep.subr.mxu0 0.0
  %474 = vmatpush1.msra.mxu0 %v456
  %475 = vmatprep.subr.mxu0 0.0
  %476 = vmatpush1.msra.mxu0 %v455
  %477 = vmatprep.subr.mxu0 0.0
  %478 = vmatpush1.msra.mxu0 %v454
  %479 = vmatprep.subr.mxu0 0.0
  %480 = vmatpush1.msra.mxu0 %v453
  %481 = vmatprep.subr.mxu0 0.0
  %482 = vmatpush1.msra.mxu0 %v452
  %483 = vmatprep.subr.mxu0 0.0
  %484 = vmatpush1.msra.mxu0 %v451
  %485 = vmatprep.subr.mxu0 0.0
  %486 = vmatpush1.msra.mxu0 %v450
  %487 = vmatprep.subr.mxu0 0.0
  %488 = vmatpush1.msra.mxu0 %v449
  %489 = vmatprep.subr.mxu0 0.0
  %490 = vmatpush1.msra.mxu0 %v448
  %491 = vmatprep.subr.mxu0 0.0
  %492 = vmatpush1.msra.mxu0 %v447
  %493 = vmatprep.subr.mxu0 0.0
  %494 = vmatpush1.msra.mxu0 %v446
  %495 = vmatprep.subr.mxu0 0.0
  %496 = vmatpush1.msra.mxu0 %v445
  %497 = vmatprep.subr.mxu0 0.0
  %498 = vmatpush1.msra.mxu0 %v444
  %499 = vmatprep.subr.mxu0 0.0
  %500 = vmatpush1.msra.mxu0 %v443
  %501 = vmatprep.subr.mxu0 0.0
  %502 = vmatpush1.msra.mxu0 %v442
  %503 = vmatprep.subr.mxu0 0.0
  %504 = vmatpush1.msra.mxu0 %v441
  %505 = vmatprep.subr.mxu0 0.0
  %506 = vmatpush2.msra.mxu0 %v472
  %507 = vmatprep.subr.mxu0 0.0
  %508 = vmatpush2.msra.mxu0 %v471
  %509 = vmatprep.subr.mxu0 0.0
  %510 = vmatpush2.msra.mxu0 %v470
  %511 = vmatprep.subr.mxu0 0.0
  %512 = vmatpush2.msra.mxu0 %v469
  %513 = vmatprep.subr.mxu0 0.0
  %514 = vmatpush2.msra.mxu0 %v468
  %515 = vmatprep.subr.mxu0 0.0
  %516 = vmatpush2.msra.mxu0 %v467
  %517 = vmatprep.subr.mxu0 0.0
  %518 = vmatpush2.msra.mxu0 %v466
  %519 = vmatprep.subr.mxu0 0.0
  %520 = vmatpush2.msra.mxu0 %v465
  %521 = vmatprep.subr.mxu0 0.0
  %522 = vmatpush2.msra.mxu0 %v464
  %523 = vmatprep.subr.mxu0 0.0
  %524 = vmatpush2.msra.mxu0 %v463
  %525 = vmatprep.subr.mxu0 0.0
  %526 = vmatpush2.msra.mxu0 %v462
  %527 = vmatprep.subr.mxu0 0.0
  %528 = vmatpush2.msra.mxu0 %v461
  %529 = vmatprep.subr.mxu0 0.0
  %530 = vmatpush2.msra.mxu0 %v460
  %531 = vmatprep.subr.mxu0 0.0
  %532 = vmatpush2.msra.mxu0 %v459
  %533 = vmatprep.subr.mxu0 0.0
  %534 = vmatpush2.msra.mxu0 %v458
  %535 = vmatprep.subr.mxu0 0.0
  %536 = vmatpush2.msra.mxu0 %v457
  %537 = vmatprep.mubr.f32.mxu0 %v417
  %538 = vmatmul.mubr.f32.gmra.mxu0 %v414
  %v539 = vpop.f32.mrf.mxu0
  %v540 = vadd.f32 0.0, %v539
  %v541 = vpop.f32.mrf.mxu0
  %542 = vmatprep.mubr.f32.mxu0 %v421
  %543 = vmatmul.mubr.f32.gmra.mxu0 %v419
  %v544 = vpop.f32.mrf.mxu0
  %v545 = vadd.f32 0.0, %v544
  %v546 = vpop.f32.mrf.mxu0
  %547 = vmatprep.mubr.f32.mxu0 %v427
  %548 = vmatmul.mubr.f32.gmra.mxu0 %v424
  %v549 = vpop.f32.mrf.mxu0
  %v550 = vadd.f32 0.0, %v549
  %v551 = vpop.f32.mrf.mxu0
  %552 = vmatprep.mubr.f32.mxu0 %v431
  %553 = vmatmul.mubr.f32.gmra.mxu0 %v429
  %v554 = vpop.f32.mrf.mxu0
  %v555 = vadd.f32 0.0, %v554
  %v556 = vpop.f32.mrf.mxu0
  %557 = vdwg.mxu0
  %v558 = vadd.f32 %v377, %v540
  %v559 = vadd.f32 %v382, %v545
  %v560 = vadd.f32 %v387, %v550
  %v561 = vadd.f32 %v392, %v555
  %v562 = vld [vmem:[%s3] sm:$0x1]
  %v564 = vlaneseq
  %v565 = vshrl.u32 %v564, 7
  %v566 = vsub.s32 0, %v565
  %v567 = vrot.slane %v562, %v566
  %v569 = vadd.f32 %v558, %v567
  %v570 = vadd.f32 %v559, %v567
  %v571 = vadd.f32 %v560, %v567
  %v572 = vadd.f32 %v561, %v567
  %s573 = sld [smem:[#allocation3]]
  %vm574 = vcmp.ge.f32.partialorder %v569, 0.0
  %vm575 = vcmp.ge.f32.partialorder %v570, 0.0
  %vm576 = vcmp.ge.f32.partialorder %v571, 0.0
  %vm577 = vcmp.ge.f32.partialorder %v572, 0.0
  %v578 = vstv %s573
  %v579 = vmul.f32 %v578, %v569
  %v580 = vmul.f32 %v578, %v570
  %v581 = vmul.f32 %v578, %v571
  %v582 = vmul.f32 %v578, %v572
  %v583 = vsel %vm574, %v569, %v579
  %v584 = vsel %vm575, %v570, %v580
  %v585 = vsel %vm576, %v571, %v581
  %v586 = vsel %vm577, %v572, %v582
  %v587 = vld [vmem:[%s5] sm:$0x3]
  %vm588 = vcmask 261120
  %v590 = vsel %vm588, %v587, 0
  %592 = vmatprep.subr.mxu0 0.0
  %593 = vmatpush1.msra.mxu0 0.0
  %594 = vmatprep.subr.mxu0 0.0
  %595 = vmatpush1.msra.mxu0 0.0
  %596 = vmatprep.subr.mxu0 0.0
  %597 = vmatpush1.msra.mxu0 0.0
  %598 = vmatprep.subr.mxu0 0.0
  %599 = vmatpush1.msra.mxu0 0.0
  %600 = vmatprep.subr.mxu0 0.0
  %601 = vmatpush1.msra.mxu0 0.0
  %602 = vmatprep.subr.mxu0 0.0
  %603 = vmatpush1.msra.mxu0 0.0
  %604 = vmatprep.subr.mxu0 0.0
  %605 = vmatpush1.msra.mxu0 0.0
  %606 = vmatprep.subr.mxu0 0.0
  %607 = vmatpush1.msra.mxu0 0.0
  %608 = vmatprep.subr.mxu0 0.0
  %609 = vmatpush1.msra.mxu0 0.0
  %610 = vmatprep.subr.mxu0 0.0
  %611 = vmatpush1.msra.mxu0 0.0
  %612 = vmatprep.subr.mxu0 0.0
  %613 = vmatpush1.msra.mxu0 0.0
  %614 = vmatprep.subr.mxu0 0.0
  %615 = vmatpush1.msra.mxu0 0.0
  %616 = vmatprep.subr.mxu0 0.0
  %617 = vmatpush1.msra.mxu0 %v586
  %618 = vmatprep.subr.mxu0 0.0
  %619 = vmatpush1.msra.mxu0 %v585
  %620 = vmatprep.subr.mxu0 0.0
  %621 = vmatpush1.msra.mxu0 %v584
  %622 = vmatprep.subr.mxu0 0.0
  %623 = vmatpush1.msra.mxu0 %v583
  %624 = vmatprep.subr.mxu0 0.0
  %625 = vmatpush2.msra.mxu0 0.0
  %626 = vmatprep.subr.mxu0 0.0
  %627 = vmatpush2.msra.mxu0 0.0
  %628 = vmatprep.subr.mxu0 0.0
  %629 = vmatpush2.msra.mxu0 0.0
  %630 = vmatprep.subr.mxu0 0.0
  %631 = vmatpush2.msra.mxu0 0.0
  %632 = vmatprep.subr.mxu0 0.0
  %633 = vmatpush2.msra.mxu0 0.0
  %634 = vmatprep.subr.mxu0 0.0
  %635 = vmatpush2.msra.mxu0 0.0
  %636 = vmatprep.subr.mxu0 0.0
  %637 = vmatpush2.msra.mxu0 0.0
  %638 = vmatprep.subr.mxu0 0.0
  %639 = vmatpush2.msra.mxu0 0.0
  %640 = vmatprep.subr.mxu0 0.0
  %641 = vmatpush2.msra.mxu0 0.0
  %642 = vmatprep.subr.mxu0 0.0
  %643 = vmatpush2.msra.mxu0 0.0
  %644 = vmatprep.subr.mxu0 0.0
  %645 = vmatpush2.msra.mxu0 0.0
  %646 = vmatprep.subr.mxu0 0.0
  %647 = vmatpush2.msra.mxu0 0.0
  %648 = vmatprep.subr.mxu0 0.0
  %649 = vmatpush2.msra.mxu0 0.0
  %650 = vmatprep.subr.mxu0 0.0
  %651 = vmatpush2.msra.mxu0 0.0
  %652 = vmatprep.subr.mxu0 0.0
  %653 = vmatpush2.msra.mxu0 0.0
  %654 = vmatprep.subr.mxu0 0.0
  %655 = vmatpush2.msra.mxu0 0.0
  %656 = vmatprep.mubr.f32.mxu0 0.0
  %657 = vmatmul.mubr.f32.gmra.mxu0 %v590
  %v658 = vpop.f32.mrf.mxu0
  %v659 = vadd.f32 0.0, %v658
  %v660 = vpop.f32.mrf.mxu0
  %661 = vdwg.mxu0
  %v662 = vld [vmem:[%s6] sm:$0xff]
  %v663 = vld [vmem:[%s6 + $0x8] sm:$0xff]
  %v664 = vld [vmem:[%s6 + $0x10] sm:$0xff]
  %v665 = vld [vmem:[%s6 + $0x18] sm:$0xff]
  %v666 = vld [vmem:[%s6 + $0x20] sm:$0xff]
  %v667 = vld [vmem:[%s6 + $0x28] sm:$0xff]
  %v668 = vld [vmem:[%s6 + $0x30] sm:$0xff]
  %v669 = vld [vmem:[%s6 + $0x38] sm:$0xff]
  %vm670 = vcmask 523264
  %v672 = vsel %vm670, %v659, 0
  %674 = vmatprep.subr.mxu0 0.0
  %675 = vmatpush1.msra.mxu0 0.0
  %676 = vmatprep.subr.mxu0 0.0
  %677 = vmatpush1.msra.mxu0 0.0
  %678 = vmatprep.subr.mxu0 0.0
  %679 = vmatpush1.msra.mxu0 0.0
  %680 = vmatprep.subr.mxu0 0.0
  %681 = vmatpush1.msra.mxu0 0.0
  %682 = vmatprep.subr.mxu0 0.0
  %683 = vmatpush1.msra.mxu0 0.0
  %684 = vmatprep.subr.mxu0 0.0
  %685 = vmatpush1.msra.mxu0 0.0
  %686 = vmatprep.subr.mxu0 0.0
  %687 = vmatpush1.msra.mxu0 0.0
  %688 = vmatprep.subr.mxu0 0.0
  %689 = vmatpush1.msra.mxu0 0.0
  %690 = vmatprep.subr.mxu0 0.0
  %691 = vmatpush1.msra.mxu0 %v669
  %692 = vmatprep.subr.mxu0 0.0
  %693 = vmatpush1.msra.mxu0 %v668
  %694 = vmatprep.subr.mxu0 0.0
  %695 = vmatpush1.msra.mxu0 %v667
  %696 = vmatprep.subr.mxu0 0.0
  %697 = vmatpush1.msra.mxu0 %v666
  %698 = vmatprep.subr.mxu0 0.0
  %699 = vmatpush1.msra.mxu0 %v665
  %700 = vmatprep.subr.mxu0 0.0
  %701 = vmatpush1.msra.mxu0 %v664
  %702 = vmatprep.subr.mxu0 0.0
  %703 = vmatpush1.msra.mxu0 %v663
  %704 = vmatprep.subr.mxu0 0.0
  %705 = vmatpush1.msra.mxu0 %v662
  %706 = vmatprep.subr.mxu0 0.0
  %707 = vmatpush2.msra.mxu0 0.0
  %708 = vmatprep.subr.mxu0 0.0
  %709 = vmatpush2.msra.mxu0 0.0
  %710 = vmatprep.subr.mxu0 0.0
  %711 = vmatpush2.msra.mxu0 0.0
  %712 = vmatprep.subr.mxu0 0.0
  %713 = vmatpush2.msra.mxu0 0.0
  %714 = vmatprep.subr.mxu0 0.0
  %715 = vmatpush2.msra.mxu0 0.0
  %716 = vmatprep.subr.mxu0 0.0
  %717 = vmatpush2.msra.mxu0 0.0
  %718 = vmatprep.subr.mxu0 0.0
  %719 = vmatpush2.msra.mxu0 0.0
  %720 = vmatprep.subr.mxu0 0.0
  %721 = vmatpush2.msra.mxu0 0.0
  %722 = vmatprep.subr.mxu0 0.0
  %723 = vmatpush2.msra.mxu0 0.0
  %724 = vmatprep.subr.mxu0 0.0
  %725 = vmatpush2.msra.mxu0 0.0
  %726 = vmatprep.subr.mxu0 0.0
  %727 = vmatpush2.msra.mxu0 0.0
  %728 = vmatprep.subr.mxu0 0.0
  %729 = vmatpush2.msra.mxu0 0.0
  %730 = vmatprep.subr.mxu0 0.0
  %731 = vmatpush2.msra.mxu0 0.0
  %732 = vmatprep.subr.mxu0 0.0
  %733 = vmatpush2.msra.mxu0 0.0
  %734 = vmatprep.subr.mxu0 0.0
  %735 = vmatpush2.msra.mxu0 0.0
  %736 = vmatprep.subr.mxu0 0.0
  %737 = vmatpush2.msra.mxu0 0.0
  %738 = vmatprep.mubr.f32.mxu0 0.0
  %739 = vmatmul.mubr.f32.gmra.mxu0 %v672
  %v740 = vpop.f32.mrf.mxu0
  %v741 = vadd.f32 0.0, %v740
  %v742 = vpop.f32.mrf.mxu0
  %743 = vdwg.mxu0
  %v744 = vmul.f32 %v583, %v583
  %v745 = vmul.f32 %v584, %v584
  %v746 = vmul.f32 %v585, %v585
  %v747 = vmul.f32 %v586, %v586
  %748 = vmatprep.subr.mxu0 0.0
  %749 = vmatpush1.msra.mxu0 0.0
  %750 = vmatprep.subr.mxu0 0.0
  %751 = vmatpush1.msra.mxu0 0.0
  %752 = vmatprep.subr.mxu0 0.0
  %753 = vmatpush1.msra.mxu0 0.0
  %754 = vmatprep.subr.mxu0 0.0
  %755 = vmatpush1.msra.mxu0 0.0
  %756 = vmatprep.subr.mxu0 0.0
  %757 = vmatpush1.msra.mxu0 0.0
  %758 = vmatprep.subr.mxu0 0.0
  %759 = vmatpush1.msra.mxu0 0.0
  %760 = vmatprep.subr.mxu0 0.0
  %761 = vmatpush1.msra.mxu0 0.0
  %762 = vmatprep.subr.mxu0 0.0
  %763 = vmatpush1.msra.mxu0 0.0
  %764 = vmatprep.subr.mxu0 0.0
  %765 = vmatpush1.msra.mxu0 0.0
  %766 = vmatprep.subr.mxu0 0.0
  %767 = vmatpush1.msra.mxu0 0.0
  %768 = vmatprep.subr.mxu0 0.0
  %769 = vmatpush1.msra.mxu0 0.0
  %770 = vmatprep.subr.mxu0 0.0
  %771 = vmatpush1.msra.mxu0 0.0
  %772 = vmatprep.subr.mxu0 0.0
  %773 = vmatpush1.msra.mxu0 %v747
  %774 = vmatprep.subr.mxu0 0.0
  %775 = vmatpush1.msra.mxu0 %v746
  %776 = vmatprep.subr.mxu0 0.0
  %777 = vmatpush1.msra.mxu0 %v745
  %778 = vmatprep.subr.mxu0 0.0
  %779 = vmatpush1.msra.mxu0 %v744
  %780 = vmatprep.subr.mxu0 0.0
  %781 = vmatpush2.msra.mxu0 0.0
  %782 = vmatprep.subr.mxu0 0.0
  %783 = vmatpush2.msra.mxu0 0.0
  %784 = vmatprep.subr.mxu0 0.0
  %785 = vmatpush2.msra.mxu0 0.0
  %786 = vmatprep.subr.mxu0 0.0
  %787 = vmatpush2.msra.mxu0 0.0
  %788 = vmatprep.subr.mxu0 0.0
  %789 = vmatpush2.msra.mxu0 0.0
  %790 = vmatprep.subr.mxu0 0.0
  %791 = vmatpush2.msra.mxu0 0.0
  %792 = vmatprep.subr.mxu0 0.0
  %793 = vmatpush2.msra.mxu0 0.0
  %794 = vmatprep.subr.mxu0 0.0
  %795 = vmatpush2.msra.mxu0 0.0
  %796 = vmatprep.subr.mxu0 0.0
  %797 = vmatpush2.msra.mxu0 0.0
  %798 = vmatprep.subr.mxu0 0.0
  %799 = vmatpush2.msra.mxu0 0.0
  %800 = vmatprep.subr.mxu0 0.0
  %801 = vmatpush2.msra.mxu0 0.0
  %802 = vmatprep.subr.mxu0 0.0
  %803 = vmatpush2.msra.mxu0 0.0
  %804 = vmatprep.subr.mxu0 0.0
  %805 = vmatpush2.msra.mxu0 0.0
  %806 = vmatprep.subr.mxu0 0.0
  %807 = vmatpush2.msra.mxu0 0.0
  %808 = vmatprep.subr.mxu0 0.0
  %809 = vmatpush2.msra.mxu0 0.0
  %810 = vmatprep.subr.mxu0 0.0
  %811 = vmatpush2.msra.mxu0 0.0
  %812 = vmatprep.mubr.f32.mxu0 0.0
  %813 = vmatmul.mubr.f32.gmra.mxu0 %v590
  %v814 = vpop.f32.mrf.mxu0
  %v815 = vadd.f32 0.0, %v814
  %v816 = vpop.f32.mrf.mxu0
  %817 = vdwg.mxu0
  %v819 = vsel %vm670, %v815, 0
  %821 = vmatprep.subr.mxu0 0.0
  %822 = vmatpush1.msra.mxu0 0.0
  %823 = vmatprep.subr.mxu0 0.0
  %824 = vmatpush1.msra.mxu0 0.0
  %825 = vmatprep.subr.mxu0 0.0
  %826 = vmatpush1.msra.mxu0 0.0
  %827 = vmatprep.subr.mxu0 0.0
  %828 = vmatpush1.msra.mxu0 0.0
  %829 = vmatprep.subr.mxu0 0.0
  %830 = vmatpush1.msra.mxu0 0.0
  %831 = vmatprep.subr.mxu0 0.0
  %832 = vmatpush1.msra.mxu0 0.0
  %833 = vmatprep.subr.mxu0 0.0
  %834 = vmatpush1.msra.mxu0 0.0
  %835 = vmatprep.subr.mxu0 0.0
  %836 = vmatpush1.msra.mxu0 0.0
  %837 = vmatprep.subr.mxu0 0.0
  %838 = vmatpush1.msra.mxu0 %v669
  %839 = vmatprep.subr.mxu0 0.0
  %840 = vmatpush1.msra.mxu0 %v668
  %841 = vmatprep.subr.mxu0 0.0
  %842 = vmatpush1.msra.mxu0 %v667
  %843 = vmatprep.subr.mxu0 0.0
  %844 = vmatpush1.msra.mxu0 %v666
  %845 = vmatprep.subr.mxu0 0.0
  %846 = vmatpush1.msra.mxu0 %v665
  %847 = vmatprep.subr.mxu0 0.0
  %848 = vmatpush1.msra.mxu0 %v664
  %849 = vmatprep.subr.mxu0 0.0
  %850 = vmatpush1.msra.mxu0 %v663
  %851 = vmatprep.subr.mxu0 0.0
  %852 = vmatpush1.msra.mxu0 %v662
  %853 = vmatprep.subr.mxu0 0.0
  %854 = vmatpush2.msra.mxu0 0.0
  %855 = vmatprep.subr.mxu0 0.0
  %856 = vmatpush2.msra.mxu0 0.0
  %857 = vmatprep.subr.mxu0 0.0
  %858 = vmatpush2.msra.mxu0 0.0
  %859 = vmatprep.subr.mxu0 0.0
  %860 = vmatpush2.msra.mxu0 0.0
  %861 = vmatprep.subr.mxu0 0.0
  %862 = vmatpush2.msra.mxu0 0.0
  %863 = vmatprep.subr.mxu0 0.0
  %864 = vmatpush2.msra.mxu0 0.0
  %865 = vmatprep.subr.mxu0 0.0
  %866 = vmatpush2.msra.mxu0 0.0
  %867 = vmatprep.subr.mxu0 0.0
  %868 = vmatpush2.msra.mxu0 0.0
  %869 = vmatprep.subr.mxu0 0.0
  %870 = vmatpush2.msra.mxu0 0.0
  %871 = vmatprep.subr.mxu0 0.0
  %872 = vmatpush2.msra.mxu0 0.0
  %873 = vmatprep.subr.mxu0 0.0
  %874 = vmatpush2.msra.mxu0 0.0
  %875 = vmatprep.subr.mxu0 0.0
  %876 = vmatpush2.msra.mxu0 0.0
  %877 = vmatprep.subr.mxu0 0.0
  %878 = vmatpush2.msra.mxu0 0.0
  %879 = vmatprep.subr.mxu0 0.0
  %880 = vmatpush2.msra.mxu0 0.0
  %881 = vmatprep.subr.mxu0 0.0
  %882 = vmatpush2.msra.mxu0 0.0
  %883 = vmatprep.subr.mxu0 0.0
  %884 = vmatpush2.msra.mxu0 0.0
  %885 = vmatprep.mubr.f32.mxu0 0.0
  %886 = vmatmul.mubr.f32.gmra.mxu0 %v819
  %v887 = vpop.f32.mrf.mxu0
  %v888 = vadd.f32 0.0, %v887
  %v889 = vpop.f32.mrf.mxu0
  %890 = vdwg.mxu0
  %v891 = vmul.f32 %v741, 0.00390625
  %v892 = vmul.f32 %v888, 0.00390625
  %v893 = vmul.f32 %v891, %v891
  %v894 = vsub.f32 %v892, %v893
  %v895 = vadd.f32 %v891, %v894
  %v896 = vld [vmem:[%s7] sm:$0xf]
  %v897 = vld [vmem:[%s8] sm:$0x1]
  %v899 = vlaneseq
  %v900 = vshrl.u32 %v899, 7
  %v901 = vsub.s32 0, %v900
  %v902 = vrot.slane %v897, %v901
  %vm904 = vcmask 31744
  %v906 = vsel %vm904, %v895, 0
  %vm908 = vcmask 1043456
  %v910 = vsel %vm908, %v896, 0
  %912 = vmatprep.subr.mxu0 0.0
  %913 = vmatpush1.msra.mxu0 0.0
  %914 = vmatprep.subr.mxu0 0.0
  %915 = vmatpush1.msra.mxu0 0.0
  %916 = vmatprep.subr.mxu0 0.0
  %917 = vmatpush1.msra.mxu0 0.0
  %918 = vmatprep.subr.mxu0 0.0
  %919 = vmatpush1.msra.mxu0 0.0
  %920 = vmatprep.subr.mxu0 0.0
  %921 = vmatpush1.msra.mxu0 0.0
  %922 = vmatprep.subr.mxu0 0.0
  %923 = vmatpush1.msra.mxu0 0.0
  %924 = vmatprep.subr.mxu0 0.0
  %925 = vmatpush1.msra.mxu0 0.0
  %926 = vmatprep.subr.mxu0 0.0
  %927 = vmatpush1.msra.mxu0 0.0
  %928 = vmatprep.subr.mxu0 0.0
  %929 = vmatpush1.msra.mxu0 0.0
  %930 = vmatprep.subr.mxu0 0.0
  %931 = vmatpush1.msra.mxu0 0.0
  %932 = vmatprep.subr.mxu0 0.0
  %933 = vmatpush1.msra.mxu0 0.0
  %934 = vmatprep.subr.mxu0 0.0
  %935 = vmatpush1.msra.mxu0 0.0
  %936 = vmatprep.subr.mxu0 0.0
  %937 = vmatpush1.msra.mxu0 0.0
  %938 = vmatprep.subr.mxu0 0.0
  %939 = vmatpush1.msra.mxu0 0.0
  %940 = vmatprep.subr.mxu0 0.0
  %941 = vmatpush1.msra.mxu0 0.0
  %942 = vmatprep.subr.mxu0 0.0
  %943 = vmatpush1.msra.mxu0 %v910
  %944 = vmatprep.subr.mxu0 0.0
  %945 = vmatpush2.msra.mxu0 0.0
  %946 = vmatprep.subr.mxu0 0.0
  %947 = vmatpush2.msra.mxu0 0.0
  %948 = vmatprep.subr.mxu0 0.0
  %949 = vmatpush2.msra.mxu0 0.0
  %950 = vmatprep.subr.mxu0 0.0
  %951 = vmatpush2.msra.mxu0 0.0
  %952 = vmatprep.subr.mxu0 0.0
  %953 = vmatpush2.msra.mxu0 0.0
  %954 = vmatprep.subr.mxu0 0.0
  %955 = vmatpush2.msra.mxu0 0.0
  %956 = vmatprep.subr.mxu0 0.0
  %957 = vmatpush2.msra.mxu0 0.0
  %958 = vmatprep.subr.mxu0 0.0
  %959 = vmatpush2.msra.mxu0 0.0
  %960 = vmatprep.subr.mxu0 0.0
  %961 = vmatpush2.msra.mxu0 0.0
  %962 = vmatprep.subr.mxu0 0.0
  %963 = vmatpush2.msra.mxu0 0.0
  %964 = vmatprep.subr.mxu0 0.0
  %965 = vmatpush2.msra.mxu0 0.0
  %966 = vmatprep.subr.mxu0 0.0
  %967 = vmatpush2.msra.mxu0 0.0
  %968 = vmatprep.subr.mxu0 0.0
  %969 = vmatpush2.msra.mxu0 0.0
  %970 = vmatprep.subr.mxu0 0.0
  %971 = vmatpush2.msra.mxu0 0.0
  %972 = vmatprep.subr.mxu0 0.0
  %973 = vmatpush2.msra.mxu0 0.0
  %974 = vmatprep.subr.mxu0 0.0
  %975 = vmatpush2.msra.mxu0 0.0
  %976 = vmatprep.mubr.f32.mxu0 0.0
  %977 = vmatmul.mubr.f32.gmra.mxu0 %v906
  %v978 = vpop.f32.mrf.mxu0
  %v979 = vadd.f32 %v902, %v978
  %v980 = vpop.f32.mrf.mxu0
  %981 = vdwg.mxu0
  %v982 = vxor.u32 %v979, 2147483648
  %v983 = vmul.f32 %v982, 1.442695
  %v984 = vpow.pop %v983
  %v985 = vadd.f32 %v984, 1.0
  %v986 = vrcp.pop %v985
  %v987 = vmul.f32 1.0, %v986
  %989 = vrot.lane.b32.xlu0 %v987, 8
  %v990 = vpop.permute.xlu0 %989
  %992 = vrot.lane.b32.xlu0 %v987, 16
  %v993 = vpop.permute.xlu0 %992
  %995 = vrot.lane.b32.xlu0 %v987, 24
  %v996 = vpop.permute.xlu0 %995
  %998 = vrot.lane.b32.xlu0 %v987, 32
  %v999 = vpop.permute.xlu0 %998
  %1001 = vrot.lane.b32.xlu0 %v987, 40
  %v1002 = vpop.permute.xlu0 %1001
  %1004 = vrot.lane.b32.xlu0 %v987, 48
  %v1005 = vpop.permute.xlu0 %1004
  %1007 = vrot.lane.b32.xlu0 %v987, 56
  %v1008 = vpop.permute.xlu0 %1007
  %1010 = vrot.lane.b32.xlu0 %v987, 64
  %v1011 = vpop.permute.xlu0 %1010
  %1013 = vrot.lane.b32.xlu0 %v987, 72
  %v1014 = vpop.permute.xlu0 %1013
  %1016 = vrot.lane.b32.xlu0 %v987, 80
  %v1017 = vpop.permute.xlu0 %1016
  %1019 = vrot.lane.b32.xlu0 %v987, 88
  %v1020 = vpop.permute.xlu0 %1019
  %1022 = vrot.lane.b32.xlu0 %v987, 96
  %v1023 = vpop.permute.xlu0 %1022
  %1025 = vrot.lane.b32.xlu0 %v987, 104
  %v1026 = vpop.permute.xlu0 %1025
  %1028 = vrot.lane.b32.xlu0 %v987, 112
  %v1029 = vpop.permute.xlu0 %1028
  %1031 = vrot.lane.b32.xlu0 %v987, 120
  %v1032 = vpop.permute.xlu0 %1031
  %vm1034 = vcmask 64512
  %v1035 = vsel %vm1034, %v987, %v990
  %vm1036 = vcmask 130048
  %v1037 = vsel %vm1036, %v1035, %v993
  %vm1038 = vcmask 195584
  %v1039 = vsel %vm1038, %v1037, %v996
  %v1040 = vsel %vm588, %v1039, %v999
  %vm1041 = vcmask 326656
  %v1042 = vsel %vm1041, %v1040, %v1002
  %vm1043 = vcmask 392192
  %v1044 = vsel %vm1043, %v1042, %v1005
  %vm1045 = vcmask 457728
  %v1046 = vsel %vm1045, %v1044, %v1008
  %v1047 = vsel %vm670, %v1046, %v1011
  %vm1048 = vcmask 588800
  %v1049 = vsel %vm1048, %v1047, %v1014
  %vm1050 = vcmask 654336
  %v1051 = vsel %vm1050, %v1049, %v1017
  %vm1052 = vcmask 719872
  %v1053 = vsel %vm1052, %v1051, %v1020
  %vm1054 = vcmask 785408
  %v1055 = vsel %vm1054, %v1053, %v1023
  %vm1056 = vcmask 850944
  %v1057 = vsel %vm1056, %v1055, %v1026
  %vm1058 = vcmask 916480
  %v1059 = vsel %vm1058, %v1057, %v1029
  %vm1060 = vcmask 982016
  %v1061 = vsel %vm1060, %v1059, %v1032
  %v1062 = vsel %vm1034, %v1032, %v987
  %v1063 = vsel %vm1036, %v1062, %v990
  %v1064 = vsel %vm1038, %v1063, %v993
  %v1065 = vsel %vm588, %v1064, %v996
  %v1066 = vsel %vm1041, %v1065, %v999
  %v1067 = vsel %vm1043, %v1066, %v1002
  %v1068 = vsel %vm1045, %v1067, %v1005
  %v1069 = vsel %vm670, %v1068, %v1008
  %v1070 = vsel %vm1048, %v1069, %v1011
  %v1071 = vsel %vm1050, %v1070, %v1014
  %v1072 = vsel %vm1052, %v1071, %v1017
  %v1073 = vsel %vm1054, %v1072, %v1020
  %v1074 = vsel %vm1056, %v1073, %v1023
  %v1075 = vsel %vm1058, %v1074, %v1026
  %v1076 = vsel %vm1060, %v1075, %v1029
  %v1077 = vld [vmem:[%s0] sm:$0xff]
  %v1078 = vld [vmem:[%s0 + $0x8] sm:$0xff]
  %v1079 = vld [vmem:[%s0 + $0x10] sm:$0xff]
  %v1080 = vld [vmem:[%s0 + $0x18] sm:$0xff]
  %v1083 = vunpack.c.l.s4 1966171168
  %v1084 = vunpack.c.0.s8 %v1083
  %v1085 = vlaneseq
  %v1086 = vshrl.u32 %v1085, 7
  %v1087 = vsub.s32 %v1084, %v1086
  %v1088 = vrot.slane %v1061, %v1087
  %v1089 = vcombine.high %v1088, %v1088
  %v1091 = vunpack.c.l.s4 1966171168
  %v1092 = vunpack.c.0.s8 %v1091
  %v1093 = vlaneseq
  %v1094 = vshrl.u32 %v1093, 7
  %v1095 = vsub.s32 %v1092, %v1094
  %v1096 = vrot.slane %v1088, %v1095
  %v1098 = vunpack.c.l.s4 1966171168
  %v1099 = vunpack.c.0.s8 %v1098
  %v1100 = vlaneseq
  %v1101 = vshrl.u32 %v1100, 7
  %v1102 = vsub.s32 %v1099, %v1101
  %v1103 = vrot.slane %v1089, %v1102
  %v1104 = vlaneseq
  %v1105 = vshrl.u32 %v1104, 7
  %v1106 = vsub.s32 0, %v1105
  %v1107 = vrot.slane %v1096, %v1106
  %v1108 = vlaneseq
  %v1109 = vshrl.u32 %v1108, 7
  %v1110 = vsub.s32 0, %v1109
  %v1111 = vrot.slane %v1103, %v1110
  %v1114 = vmul.f32 %v1077, %v1107
  %v1115 = vmul.f32 %v1078, %v1107
  %v1116 = vmul.f32 %v1079, %v1111
  %v1117 = vmul.f32 %v1080, %v1111
  %v1118 = vmul.f32 %v1114, 0.5
  %v1119 = vmul.f32 %v1115, 0.5
  %v1120 = vmul.f32 %v1116, 0.5
  %v1121 = vmul.f32 %v1117, 0.5
  %1122 = vst [vmem:[%s9] sm:$0xff] %v1118
  %1123 = vst [vmem:[%s9 + $0x8] sm:$0xff] %v1119
  %1124 = vst [vmem:[%s9 + $0x10] sm:$0xff] %v1120
  %1125 = vst [vmem:[%s9 + $0x18] sm:$0xff] %v1121
  %v1126 = vld [vmem:[%s1] sm:$0xff]
  %v1127 = vld [vmem:[%s1 + $0x8] sm:$0xff]
  %v1128 = vld [vmem:[%s1 + $0x10] sm:$0xff]
  %v1129 = vld [vmem:[%s1 + $0x18] sm:$0xff]
  %v1132 = vunpack.c.l.s4 1966171168
  %v1133 = vunpack.c.0.s8 %v1132
  %v1134 = vlaneseq
  %v1135 = vshrl.u32 %v1134, 7
  %v1136 = vsub.s32 %v1133, %v1135
  %v1137 = vrot.slane %v1076, %v1136
  %v1138 = vcombine.high %v1137, %v1137
  %v1140 = vunpack.c.l.s4 1966171168
  %v1141 = vunpack.c.0.s8 %v1140
  %v1142 = vlaneseq
  %v1143 = vshrl.u32 %v1142, 7
  %v1144 = vsub.s32 %v1141, %v1143
  %v1145 = vrot.slane %v1137, %v1144
  %v1147 = vunpack.c.l.s4 1966171168
  %v1148 = vunpack.c.0.s8 %v1147
  %v1149 = vlaneseq
  %v1150 = vshrl.u32 %v1149, 7
  %v1151 = vsub.s32 %v1148, %v1150
  %v1152 = vrot.slane %v1138, %v1151
  %v1153 = vlaneseq
  %v1154 = vshrl.u32 %v1153, 7
  %v1155 = vsub.s32 0, %v1154
  %v1156 = vrot.slane %v1145, %v1155
  %v1157 = vlaneseq
  %v1158 = vshrl.u32 %v1157, 7
  %v1159 = vsub.s32 0, %v1158
  %v1160 = vrot.slane %v1152, %v1159
  %v1163 = vmul.f32 %v1126, %v1156
  %v1164 = vmul.f32 %v1127, %v1156
  %v1165 = vmul.f32 %v1128, %v1160
  %v1166 = vmul.f32 %v1129, %v1160
  %v1167 = vmul.f32 %v1163, 0.5
  %v1168 = vmul.f32 %v1164, 0.5
  %v1169 = vmul.f32 %v1165, 0.5
  %v1170 = vmul.f32 %v1166, 0.5
  %1171 = vst [vmem:[%s10] sm:$0xff] %v1167
  %1172 = vst [vmem:[%s10 + $0x8] sm:$0xff] %v1168
  %1173 = vst [vmem:[%s10 + $0x10] sm:$0xff] %v1169
  %1174 = vst [vmem:[%s10 + $0x18] sm:$0xff] %v1170
  // Predicated region
  $region38: #{mmab_pallas.1} parent=0 // pred_check
    _
  $region39: #{mmab_pallas.1} parent=0 // pred_check_branch
    %1176 = sbr.rel (0) target = $region41
  $region40: #{mmab_pallas.1} parent=0 // pred_region
    _
  $region41: #{mmab_pallas.1} parent=0 // pred_fallthru
    _
  // Predicated region
  $region42: #{mmab_pallas.1} parent=0 // pred_check
    _
  $region43: #{mmab_pallas.1} parent=0 // pred_check_branch
    %1178 = sbr.rel (0) target = $region45
  $region44: #{mmab_pallas.1} parent=0 // pred_region
    _
  $region45: #{mmab_pallas.1} parent=0 // pred_fallthru
    _
  // Predicated region
  $region46: #{mmab_pallas.1} parent=0 // pred_check
    _
  $region47: #{mmab_pallas.1} parent=0 // pred_check_branch
    %1180 = sbr.rel (0) target = $region49
  $region48: #{mmab_pallas.1} parent=0 // pred_region
    _
  $region49: #{mmab_pallas.1} parent=0 // pred_fallthru
    _
  // Predicated region
  $region50: #{mmab_pallas.1} parent=0 // pred_check
    _
  $region51: #{mmab_pallas.1} parent=0 // pred_check_branch
    %1182 = sbr.rel (0) target = $region53
  $region52: #{mmab_pallas.1} parent=0 // pred_region
    _
  $region53: #{mmab_pallas.1} parent=0 // pred_fallthru
    _

</llo_original>
